<compile_context>
chip_gen: v6e
topology: v6e:2x2x1
jax: 0.10.0
libtpu: 0.0.40
codegen_flags: <defaults>
</compile_context>

<pallas_src>
import jax
import jax.numpy as jnp
from jax.experimental import pallas as pl
from jax.experimental.pallas import tpu as pltpu


# ----------------------------------------------------------------------------
# Fused Pallas kernel: full 2-step decode (embed -> GRU -> proj -> sample)
# ----------------------------------------------------------------------------
def _object_decoder_kernel(start_ref, inp_ref, h0_ref, wemb_ref, winp_ref,
                           whh_ref, bih_ref, bhh_ref, wout_ref, bout_ref,
                           mask_ref, gumbel_ref, logits_ref, words_ref):
    """Runs all decode steps with weights resident in VMEM.

    start  : SMEM (1,) int32   <s> token id
    inp    : (B, H)   f32      encoder context
    h0     : (B, H)   f32      initial hidden state
    wemb   : (V, 3H)  bf16     embedding @ wih[:H]  (folded, gate cols r|z|n)
    winp   : (H, 3H)  bf16     wih[H:2H]            (encoder-context gate weights)
    whh    : (H, 3H)  bf16     hidden-to-hidden gate weights
    bih    : (1, 3H)  f32
    bhh    : (1, 3H)  f32
    wout   : (H, V)   bf16     output projection
    bout   : (1, V)   f32
    mask   : (B, V)   int32    graph mask (>0 means allowed)
    gumbel : (S, B, V) f32     precomputed Gumbel noise for sampling
    outs   : logits (S, B, V) f32, words (S, B, 1) int32
    """
    B, H = h0_ref.shape
    V = wout_ref.shape[1]
    steps = logits_ref.shape[0]

    wemb = wemb_ref[...]                                  # (V, 3H) bf16
    whh = whh_ref[...]                                    # (H, 3H) bf16
    wout = wout_ref[...]                                  # (H, V)  bf16
    bhh = bhh_ref[...]                                    # (1, 3H) f32
    bout = bout_ref[...]                                  # (1, V)  f32
    allowed = mask_ref[...] > 0                           # (B, V)  bool
    iota_v = jax.lax.broadcasted_iota(jnp.int32, (B, V), 1)
    iota_f = iota_v.astype(jnp.float32)

    # Loop-invariant encoder-context gate contribution (+ input bias), once.
    gxi = jnp.dot(inp_ref[...].astype(jnp.bfloat16), winp_ref[...],
                  preferred_element_type=jnp.float32) + bih_ref[...]   # (B, 3H)

    h = h0_ref[...]                                               # (B, H) f32
    tok = jnp.full((B, 1), start_ref[0], dtype=jnp.int32)         # <s> tokens

    for di in range(steps):                                       # static unroll (2)
        # ---- embedding + x-gate contribution as one-hot MXU matmul ----------
        onehot = jnp.where(iota_v == tok, 1.0, 0.0).astype(jnp.bfloat16)   # (B, V)
        gx = jnp.dot(onehot, wemb, preferred_element_type=jnp.float32) + gxi
        gh = jnp.dot(h.astype(jnp.bfloat16), whh,
                     preferred_element_type=jnp.float32) + bhh             # (B, 3H)

        # ---- GRU cell (PyTorch gate order r, z, n) ---------------------------
        r = jax.nn.sigmoid(gx[:, 0 * H:1 * H] + gh[:, 0 * H:1 * H])
        z = jax.nn.sigmoid(gx[:, 1 * H:2 * H] + gh[:, 1 * H:2 * H])
        n = jnp.tanh(gx[:, 2 * H:3 * H] + r * gh[:, 2 * H:3 * H])
        h = (1.0 - z) * n + z * h                                  # (B, H) f32

        # ---- output projection ("ret_decoder_output") ------------------------
        logits = jnp.dot(h.astype(jnp.bfloat16), wout,
                         preferred_element_type=jnp.float32) + bout        # (B, V)
        logits_ref[di, :, :] = logits

        # ---- graph-masked categorical sampling via Gumbel-max ----------------
        masked = jnp.where(allowed, logits, jnp.float32(-1e30))
        perturbed = masked + gumbel_ref[di, :, :]
        mx = jnp.max(perturbed, axis=1, keepdims=True)
        tok_f = jnp.min(
            jnp.where(perturbed == mx, iota_f, jnp.float32(V)),
            axis=1, keepdims=True)                                 # lowest-index argmax
        tok = jnp.minimum(tok_f, jnp.float32(V - 1)).astype(jnp.int32)
        words_ref[di, :, :] = tok


def _fused_object_decoder(start_tok, inp, h0, wemb_bf, winp_bf, whh_bf, bih,
                          bhh, wout_bf, bout, mask_i32, gumbel, *, max_steps):
    B, H = h0.shape
    V = wout_bf.shape[1]
    smem = pl.BlockSpec(memory_space=pltpu.MemorySpace.SMEM)
    vmem = pl.BlockSpec(memory_space=pltpu.MemorySpace.VMEM)

    flops = int(2 * B * H * 3 * H                       # gxi (once)
                + 2 * max_steps * B * (V * 3 * H        # onehot @ wemb
                                       + H * 3 * H      # h @ whh
                                       + H * V))        # h @ wout
    transcendentals = int(max_steps * B * 3 * H)
    bytes_accessed = int(
        2 * (wemb_bf.size + winp_bf.size + whh_bf.size + wout_bf.size)
        + 4 * (inp.size + h0.size + bih.size + bhh.size + bout.size
               + mask_i32.size + gumbel.size
               + max_steps * B * V + max_steps * B))

    return pl.pallas_call(
        _object_decoder_kernel,
        out_shape=(
            jax.ShapeDtypeStruct((max_steps, B, V), jnp.float32),   # raw logits
            jax.ShapeDtypeStruct((max_steps, B, 1), jnp.int32),     # sampled ids
        ),
        in_specs=[smem] + [vmem] * 11,
        out_specs=(vmem, vmem),
        cost_estimate=pl.CostEstimate(flops=flops,
                                      transcendentals=transcendentals,
                                      bytes_accessed=bytes_accessed),
    )(start_tok, inp, h0, wemb_bf, winp_bf, whh_bf, bih, bhh, wout_bf, bout,
      mask_i32, gumbel)


# ----------------------------------------------------------------------------
# ObjectDecoder forward (k == 1 path)
# ----------------------------------------------------------------------------
class ObjectDecoderPallas:
    def __init__(self, input_size, hidden_size, output_size, embeddings,
                 graph_dropout, k, *, seed=0):
        assert k == 1, "only the k == 1 sampling path is implemented"
        self.k = k
        self.hidden_size = hidden_size
        self.output_size = output_size
        self.max_decode_steps = 2

        H, V = hidden_size, output_size
        key = jax.random.PRNGKey(seed)
        ks = jax.random.split(key, 8)
        scale = 1.0 / jnp.sqrt(jnp.float32(H))

        # ---- reference f32 parameters (PyTorch GRU layout, gate order r,z,n) --
        self.embedding = embeddings if embeddings is not None else (
            jax.random.normal(ks[0], (V, H), jnp.float32) * scale)
        self.wih = jax.random.normal(ks[1], (2 * H, 3 * H), jnp.float32) * scale
        self.whh = jax.random.normal(ks[2], (H, 3 * H), jnp.float32) * scale
        self.bih = jax.random.uniform(ks[3], (1, 3 * H), jnp.float32, -scale, scale)
        self.bhh = jax.random.uniform(ks[4], (1, 3 * H), jnp.float32, -scale, scale)
        self.wout = jax.random.normal(ks[5], (H, V), jnp.float32) * scale
        self.bout = jax.random.uniform(ks[6], (1, V), jnp.float32, -scale, scale)

        # ---- packed bf16 kernel parameters (no zero padding) ------------------
        # Embedding folded into the x-gate weights: onehot @ (emb @ wih[:H]).
        self.wemb_bf = (self.embedding @ self.wih[:H, :]).astype(jnp.bfloat16)   # (V, 3H)
        self.winp_bf = self.wih[H:2 * H, :].astype(jnp.bfloat16)                 # (H, 3H)
        self.whh_bf = self.whh.astype(jnp.bfloat16)                              # (H, 3H)
        self.wout_bf = self.wout.astype(jnp.bfloat16)                            # (H, V)

    def forward(self, inp, input_hidden, vocab, vocab_rev, decode_steps_t,
                graphs, *, rng):
        """inp: (B,H) encoder output; input_hidden: (B,H); graphs: (B,V) {0,1}."""
        B = inp.shape[0]
        start = jnp.array([vocab_rev['<s>']], dtype=jnp.int32)
        gumbel = jax.random.gumbel(
            rng, (self.max_decode_steps, B, self.output_size), jnp.float32)
        all_outputs, words = _fused_object_decoder(
            start, inp, input_hidden, self.wemb_bf, self.winp_bf, self.whh_bf,
            self.bih, self.bhh, self.wout_bf, self.bout,
            graphs.astype(jnp.int32), gumbel,
            max_steps=self.max_decode_steps)
        return all_outputs, words[..., 0]


# ----------------------------------------------------------------------------
# Demo
# ----------------------------------------------------------------------------
if __name__ == "__main__":
    B = 8            # batch
    H = 128          # hidden_size (== encoder context size)
    V = 256          # output_size (object vocab)

    key = jax.random.PRNGKey(0)
    k_in, k_hid, k_graph, k_samp = jax.random.split(key, 4)

    inp = jax.random.normal(k_in, (B, H), jnp.float32)           # encoder output
    input_hidden = jax.random.normal(k_hid, (B, H), jnp.float32)
    # graph mask: ~25% objects present; force first 8 always present (>=1 per row)
    graphs = (jax.random.uniform(k_graph, (B, V)) < 0.25).astype(jnp.int32)
    graphs = graphs.at[:, :8].set(1)

    vocab = {i: f"obj_{i}" for i in range(V)}
    vocab_rev = {f"obj_{i}": i for i in range(V)}
    vocab_rev['<s>'] = 2

    model = ObjectDecoderPallas(input_size=H, hidden_size=H, output_size=V,
                                embeddings=None, graph_dropout=0.0, k=1, seed=0)

    all_outputs, all_words = model.forward(
        inp, input_hidden, vocab, vocab_rev, decode_steps_t=None,
        graphs=graphs, rng=k_samp)
    jax.block_until_ready((all_outputs, all_words))

    assert all_outputs.shape == (2, B, V)
    assert all_words.shape == (2, B)
    # sampled objects must lie inside each batch element's graph
    ok = jnp.all(jnp.take_along_axis(graphs, all_words.T, axis=1) == 1)
    assert bool(ok)

    # cross-check kernel logits against a pure-JAX f32 GRU reference, feeding it
    # the tokens the kernel actually sampled (bf16 matmuls -> loose tolerance)
    h_ref = input_hidden
    tok = jnp.full((B,), vocab_rev['<s>'], jnp.int32)
    max_err = 0.0
    for di in range(2):
        x_emb = jnp.take(model.embedding, tok, axis=0)
        xin = jnp.concatenate([x_emb, inp], axis=1)
        gx = xin @ model.wih + model.bih
        gh = h_ref @ model.whh + model.bhh
        r = jax.nn.sigmoid(gx[:, :H] + gh[:, :H])
        z = jax.nn.sigmoid(gx[:, H:2 * H] + gh[:, H:2 * H])
        n = jnp.tanh(gx[:, 2 * H:] + r * gh[:, 2 * H:])
        h_ref = (1.0 - z) * n + z * h_ref
        logits_ref = h_ref @ model.wout + model.bout
        max_err = max(max_err,
                      float(jnp.max(jnp.abs(logits_ref - all_outputs[di]))))
        tok = all_words[di]
    assert max_err < 0.1, f"logits mismatch vs f32 reference: {max_err}"

    print("KERNEL_OK")
</pallas_src>

<mosaic_0001>
module attributes {stable_mosaic.version = 11 : i64} {
  func.func @_object_decoder_kernel(%arg0: memref<1xi32, #tpu.memory_space<smem>>, %arg1: memref<8x128xf32, #tpu.memory_space<vmem>>, %arg2: memref<8x128xf32, #tpu.memory_space<vmem>>, %arg3: memref<256x384xbf16, #tpu.memory_space<vmem>>, %arg4: memref<128x384xbf16, #tpu.memory_space<vmem>>, %arg5: memref<128x384xbf16, #tpu.memory_space<vmem>>, %arg6: memref<1x384xf32, #tpu.memory_space<vmem>>, %arg7: memref<1x384xf32, #tpu.memory_space<vmem>>, %arg8: memref<128x256xbf16, #tpu.memory_space<vmem>>, %arg9: memref<1x256xf32, #tpu.memory_space<vmem>>, %arg10: memref<8x256xi32, #tpu.memory_space<vmem>>, %arg11: memref<2x8x256xf32, #tpu.memory_space<vmem>>, %arg12: memref<2x8x256xf32, #tpu.memory_space<vmem>>, %arg13: memref<2x8x1xi32, #tpu.memory_space<vmem>>) attributes {dimension_semantics = [], scalar_prefetch = 0 : i64, scratch_operands = 0 : i64, tpu.core_type = #tpu.core_type<tc>} {
    %c0 = arith.constant 0 : index
    %c0_0 = arith.constant 0 : index
    %0 = vector.load %arg3[%c0, %c0_0] : memref<256x384xbf16, #tpu.memory_space<vmem>>, vector<256x384xbf16>
    %c0_1 = arith.constant 0 : index
    %c0_2 = arith.constant 0 : index
    %1 = vector.load %arg5[%c0_1, %c0_2] : memref<128x384xbf16, #tpu.memory_space<vmem>>, vector<128x384xbf16>
    %c0_3 = arith.constant 0 : index
    %c0_4 = arith.constant 0 : index
    %2 = vector.load %arg8[%c0_3, %c0_4] : memref<128x256xbf16, #tpu.memory_space<vmem>>, vector<128x256xbf16>
    %c0_5 = arith.constant 0 : index
    %c0_6 = arith.constant 0 : index
    %3 = vector.load %arg7[%c0_5, %c0_6] : memref<1x384xf32, #tpu.memory_space<vmem>>, vector<1x384xf32>
    %c0_7 = arith.constant 0 : index
    %c0_8 = arith.constant 0 : index
    %4 = vector.load %arg9[%c0_7, %c0_8] : memref<1x256xf32, #tpu.memory_space<vmem>>, vector<1x256xf32>
    %c0_9 = arith.constant 0 : index
    %c0_10 = arith.constant 0 : index
    %5 = vector.load %arg10[%c0_9, %c0_10] : memref<8x256xi32, #tpu.memory_space<vmem>>, vector<8x256xi32>
    %c0_i32 = arith.constant 0 : i32
    %6 = vector.broadcast %c0_i32 : i32 to vector<8x256xi32>
    %7 = arith.cmpi sgt, %5, %6 : vector<8x256xi32>
    %8 = tpu.iota {dimensions = array<i32: 1>} : vector<8x256xi32>
    %9 = arith.sitofp %8 : vector<8x256xi32> to vector<8x256xf32>
    %c0_11 = arith.constant 0 : index
    %c0_12 = arith.constant 0 : index
    %10 = vector.load %arg1[%c0_11, %c0_12] : memref<8x128xf32, #tpu.memory_space<vmem>>, vector<8x128xf32>
    %11 = arith.truncf %10 : vector<8x128xf32> to vector<8x128xbf16>
    %c0_13 = arith.constant 0 : index
    %c0_14 = arith.constant 0 : index
    %12 = vector.load %arg4[%c0_13, %c0_14] : memref<128x384xbf16, #tpu.memory_space<vmem>>, vector<128x384xbf16>
    %cst = arith.constant dense<0.000000e+00> : vector<8x384xf32>
    %13 = tpu.matmul %11, %12, %cst {dimension_numbers = #tpu.dot_dimension_numbers<[1], [0], [0], [1], [0, 0, 1, 1], [], []>} : vector<8x128xbf16>, vector<128x384xbf16>, vector<8x384xf32> -> vector<8x384xf32>
    %c0_15 = arith.constant 0 : index
    %c0_16 = arith.constant 0 : index
    %14 = vector.load %arg6[%c0_15, %c0_16] : memref<1x384xf32, #tpu.memory_space<vmem>>, vector<1x384xf32>
    %15 = vector.broadcast %14 : vector<1x384xf32> to vector<8x384xf32>
    %16 = arith.addf %13, %15 : vector<8x384xf32>
    %c0_17 = arith.constant 0 : index
    %c0_18 = arith.constant 0 : index
    %17 = vector.load %arg2[%c0_17, %c0_18] : memref<8x128xf32, #tpu.memory_space<vmem>>, vector<8x128xf32>
    %c0_19 = arith.constant 0 : index
    %18 = memref.load %arg0[%c0_19] : memref<1xi32, #tpu.memory_space<smem>>
    %19 = vector.broadcast %18 : i32 to vector<8x1xi32>
    %20 = vector.broadcast %19 : vector<8x1xi32> to vector<8x256xi32>
    %21 = arith.cmpi eq, %8, %20 : vector<8x256xi32>
    %cst_20 = arith.constant 1.000000e+00 : f32
    %cst_21 = arith.constant 0.000000e+00 : f32
    %22 = vector.broadcast %cst_20 : f32 to vector<8x256xf32>
    %23 = vector.broadcast %cst_21 : f32 to vector<8x256xf32>
    %24 = arith.select %21, %22, %23 : vector<8x256xi1>, vector<8x256xf32>
    %25 = arith.truncf %24 : vector<8x256xf32> to vector<8x256xbf16>
    %cst_22 = arith.constant dense<0.000000e+00> : vector<8x384xf32>
    %26 = tpu.matmul %25, %0, %cst_22 {dimension_numbers = #tpu.dot_dimension_numbers<[1], [0], [0], [1], [0, 0, 1, 1], [], []>} : vector<8x256xbf16>, vector<256x384xbf16>, vector<8x384xf32> -> vector<8x384xf32>
    %27 = arith.addf %26, %16 : vector<8x384xf32>
    %28 = arith.truncf %17 : vector<8x128xf32> to vector<8x128xbf16>
    %cst_23 = arith.constant dense<0.000000e+00> : vector<8x384xf32>
    %29 = tpu.matmul %28, %1, %cst_23 {dimension_numbers = #tpu.dot_dimension_numbers<[1], [0], [0], [1], [0, 0, 1, 1], [], []>} : vector<8x128xbf16>, vector<128x384xbf16>, vector<8x384xf32> -> vector<8x384xf32>
    %30 = vector.broadcast %3 : vector<1x384xf32> to vector<8x384xf32>
    %31 = arith.addf %29, %30 : vector<8x384xf32>
    %32 = vector.extract_strided_slice %27 {offsets = [0, 0], sizes = [8, 128], strides = [1, 1]} : vector<8x384xf32> to vector<8x128xf32>
    %33 = vector.extract_strided_slice %31 {offsets = [0, 0], sizes = [8, 128], strides = [1, 1]} : vector<8x384xf32> to vector<8x128xf32>
    %34 = arith.addf %32, %33 : vector<8x128xf32>
    %35 = arith.negf %34 : vector<8x128xf32>
    %36 = math.exp %35 : vector<8x128xf32>
    %cst_24 = arith.constant 1.000000e+00 : f32
    %37 = vector.broadcast %cst_24 : f32 to vector<8x128xf32>
    %38 = arith.addf %37, %36 : vector<8x128xf32>
    %39 = arith.divf %37, %38 : vector<8x128xf32>
    %40 = vector.extract_strided_slice %27 {offsets = [0, 128], sizes = [8, 128], strides = [1, 1]} : vector<8x384xf32> to vector<8x128xf32>
    %41 = vector.extract_strided_slice %31 {offsets = [0, 128], sizes = [8, 128], strides = [1, 1]} : vector<8x384xf32> to vector<8x128xf32>
    %42 = arith.addf %40, %41 : vector<8x128xf32>
    %43 = arith.negf %42 : vector<8x128xf32>
    %44 = math.exp %43 : vector<8x128xf32>
    %cst_25 = arith.constant 1.000000e+00 : f32
    %45 = vector.broadcast %cst_25 : f32 to vector<8x128xf32>
    %46 = arith.addf %45, %44 : vector<8x128xf32>
    %47 = arith.divf %45, %46 : vector<8x128xf32>
    %48 = vector.extract_strided_slice %27 {offsets = [0, 256], sizes = [8, 128], strides = [1, 1]} : vector<8x384xf32> to vector<8x128xf32>
    %49 = vector.extract_strided_slice %31 {offsets = [0, 256], sizes = [8, 128], strides = [1, 1]} : vector<8x384xf32> to vector<8x128xf32>
    %50 = arith.mulf %39, %49 : vector<8x128xf32>
    %51 = arith.addf %48, %50 : vector<8x128xf32>
    %52 = math.tanh %51 : vector<8x128xf32>
    %cst_26 = arith.constant 1.000000e+00 : f32
    %53 = vector.broadcast %cst_26 : f32 to vector<8x128xf32>
    %54 = arith.subf %53, %47 : vector<8x128xf32>
    %55 = arith.mulf %54, %52 : vector<8x128xf32>
    %56 = arith.mulf %47, %17 : vector<8x128xf32>
    %57 = arith.addf %55, %56 : vector<8x128xf32>
    %58 = arith.truncf %57 : vector<8x128xf32> to vector<8x128xbf16>
    %cst_27 = arith.constant dense<0.000000e+00> : vector<8x256xf32>
    %59 = tpu.matmul %58, %2, %cst_27 {dimension_numbers = #tpu.dot_dimension_numbers<[1], [0], [0], [1], [0, 0, 1, 1], [], []>} : vector<8x128xbf16>, vector<128x256xbf16>, vector<8x256xf32> -> vector<8x256xf32>
    %60 = vector.broadcast %4 : vector<1x256xf32> to vector<8x256xf32>
    %61 = arith.addf %59, %60 : vector<8x256xf32>
    %c0_28 = arith.constant 0 : index
    %c0_29 = arith.constant 0 : index
    %c0_30 = arith.constant 0 : index
    %62 = vector.load %arg12[%c0_28, %c0_29, %c0_30] : memref<2x8x256xf32, #tpu.memory_space<vmem>>, vector<1x8x256xf32>
    %63 = vector.shape_cast %62 : vector<1x8x256xf32> to vector<8x256xf32>
    %64 = vector.shape_cast %61 : vector<8x256xf32> to vector<1x8x256xf32>
    tpu.vector_store %arg12[%c0_28, %c0_29, %c0_30], %64 {strides = array<i32>} : memref<2x8x256xf32, #tpu.memory_space<vmem>>, vector<1x8x256xf32>,
    %cst_31 = arith.constant -1.000000e+30 : f32
    %65 = vector.broadcast %cst_31 : f32 to vector<8x256xf32>
    %66 = arith.select %7, %61, %65 : vector<8x256xi1>, vector<8x256xf32>
    %c0_32 = arith.constant 0 : index
    %c0_33 = arith.constant 0 : index
    %c0_34 = arith.constant 0 : index
    %67 = vector.load %arg11[%c0_32, %c0_33, %c0_34] : memref<2x8x256xf32, #tpu.memory_space<vmem>>, vector<1x8x256xf32>
    %68 = vector.shape_cast %67 : vector<1x8x256xf32> to vector<8x256xf32>
    %69 = arith.addf %66, %68 : vector<8x256xf32>
    %cst_35 = arith.constant dense<0xFF800000> : vector<8xf32>
    %70 = vector.multi_reduction <maximumf>, %69, %cst_35 [1] : vector<8x256xf32> to vector<8xf32>
    %71 = vector.shape_cast %70 : vector<8xf32> to vector<8x1xf32>
    %72 = vector.broadcast %71 : vector<8x1xf32> to vector<8x256xf32>
    %73 = arith.cmpf oeq, %69, %72 : vector<8x256xf32>
    %cst_36 = arith.constant 2.560000e+02 : f32
    %74 = vector.broadcast %cst_36 : f32 to vector<8x256xf32>
    %75 = arith.select %73, %9, %74 : vector<8x256xi1>, vector<8x256xf32>
    %cst_37 = arith.constant dense<0x7F800000> : vector<8xf32>
    %76 = vector.multi_reduction <minimumf>, %75, %cst_37 [1] : vector<8x256xf32> to vector<8xf32>
    %77 = vector.shape_cast %76 : vector<8xf32> to vector<8x1xf32>
    %cst_38 = arith.constant 2.550000e+02 : f32
    %78 = vector.broadcast %cst_38 : f32 to vector<8x1xf32>
    %79 = arith.minimumf %77, %78 : vector<8x1xf32>
    %80 = arith.fptosi %79 : vector<8x1xf32> to vector<8x1xi32>
    %c0_39 = arith.constant 0 : index
    %c0_40 = arith.constant 0 : index
    %c0_41 = arith.constant 0 : index
    %81 = vector.load %arg13[%c0_39, %c0_40, %c0_41] : memref<2x8x1xi32, #tpu.memory_space<vmem>>, vector<1x8x1xi32>
    %82 = vector.shape_cast %81 : vector<1x8x1xi32> to vector<8x1xi32>
    %83 = vector.shape_cast %80 : vector<8x1xi32> to vector<1x8x1xi32>
    tpu.vector_store %arg13[%c0_39, %c0_40, %c0_41], %83 {strides = array<i32>} : memref<2x8x1xi32, #tpu.memory_space<vmem>>, vector<1x8x1xi32>,
    %84 = vector.broadcast %80 : vector<8x1xi32> to vector<8x256xi32>
    %85 = arith.cmpi eq, %8, %84 : vector<8x256xi32>
    %cst_42 = arith.constant 1.000000e+00 : f32
    %cst_43 = arith.constant 0.000000e+00 : f32
    %86 = vector.broadcast %cst_42 : f32 to vector<8x256xf32>
    %87 = vector.broadcast %cst_43 : f32 to vector<8x256xf32>
    %88 = arith.select %85, %86, %87 : vector<8x256xi1>, vector<8x256xf32>
    %89 = arith.truncf %88 : vector<8x256xf32> to vector<8x256xbf16>
    %cst_44 = arith.constant dense<0.000000e+00> : vector<8x384xf32>
    %90 = tpu.matmul %89, %0, %cst_44 {dimension_numbers = #tpu.dot_dimension_numbers<[1], [0], [0], [1], [0, 0, 1, 1], [], []>} : vector<8x256xbf16>, vector<256x384xbf16>, vector<8x384xf32> -> vector<8x384xf32>
    %91 = arith.addf %90, %16 : vector<8x384xf32>
    %92 = arith.truncf %57 : vector<8x128xf32> to vector<8x128xbf16>
    %cst_45 = arith.constant dense<0.000000e+00> : vector<8x384xf32>
    %93 = tpu.matmul %92, %1, %cst_45 {dimension_numbers = #tpu.dot_dimension_numbers<[1], [0], [0], [1], [0, 0, 1, 1], [], []>} : vector<8x128xbf16>, vector<128x384xbf16>, vector<8x384xf32> -> vector<8x384xf32>
    %94 = vector.broadcast %3 : vector<1x384xf32> to vector<8x384xf32>
    %95 = arith.addf %93, %94 : vector<8x384xf32>
    %96 = vector.extract_strided_slice %91 {offsets = [0, 0], sizes = [8, 128], strides = [1, 1]} : vector<8x384xf32> to vector<8x128xf32>
    %97 = vector.extract_strided_slice %95 {offsets = [0, 0], sizes = [8, 128], strides = [1, 1]} : vector<8x384xf32> to vector<8x128xf32>
    %98 = arith.addf %96, %97 : vector<8x128xf32>
    %99 = arith.negf %98 : vector<8x128xf32>
    %100 = math.exp %99 : vector<8x128xf32>
    %cst_46 = arith.constant 1.000000e+00 : f32
    %101 = vector.broadcast %cst_46 : f32 to vector<8x128xf32>
    %102 = arith.addf %101, %100 : vector<8x128xf32>
    %103 = arith.divf %101, %102 : vector<8x128xf32>
    %104 = vector.extract_strided_slice %91 {offsets = [0, 128], sizes = [8, 128], strides = [1, 1]} : vector<8x384xf32> to vector<8x128xf32>
    %105 = vector.extract_strided_slice %95 {offsets = [0, 128], sizes = [8, 128], strides = [1, 1]} : vector<8x384xf32> to vector<8x128xf32>
    %106 = arith.addf %104, %105 : vector<8x128xf32>
    %107 = arith.negf %106 : vector<8x128xf32>
    %108 = math.exp %107 : vector<8x128xf32>
    %cst_47 = arith.constant 1.000000e+00 : f32
    %109 = vector.broadcast %cst_47 : f32 to vector<8x128xf32>
    %110 = arith.addf %109, %108 : vector<8x128xf32>
    %111 = arith.divf %109, %110 : vector<8x128xf32>
    %112 = vector.extract_strided_slice %91 {offsets = [0, 256], sizes = [8, 128], strides = [1, 1]} : vector<8x384xf32> to vector<8x128xf32>
    %113 = vector.extract_strided_slice %95 {offsets = [0, 256], sizes = [8, 128], strides = [1, 1]} : vector<8x384xf32> to vector<8x128xf32>
    %114 = arith.mulf %103, %113 : vector<8x128xf32>
    %115 = arith.addf %112, %114 : vector<8x128xf32>
    %116 = math.tanh %115 : vector<8x128xf32>
    %cst_48 = arith.constant 1.000000e+00 : f32
    %117 = vector.broadcast %cst_48 : f32 to vector<8x128xf32>
    %118 = arith.subf %117, %111 : vector<8x128xf32>
    %119 = arith.mulf %118, %116 : vector<8x128xf32>
    %120 = arith.mulf %111, %57 : vector<8x128xf32>
    %121 = arith.addf %119, %120 : vector<8x128xf32>
    %122 = arith.truncf %121 : vector<8x128xf32> to vector<8x128xbf16>
    %cst_49 = arith.constant dense<0.000000e+00> : vector<8x256xf32>
    %123 = tpu.matmul %122, %2, %cst_49 {dimension_numbers = #tpu.dot_dimension_numbers<[1], [0], [0], [1], [0, 0, 1, 1], [], []>} : vector<8x128xbf16>, vector<128x256xbf16>, vector<8x256xf32> -> vector<8x256xf32>
    %124 = vector.broadcast %4 : vector<1x256xf32> to vector<8x256xf32>
    %125 = arith.addf %123, %124 : vector<8x256xf32>
    %c1 = arith.constant 1 : index
    %c0_50 = arith.constant 0 : index
    %c0_51 = arith.constant 0 : index
    %126 = vector.load %arg12[%c1, %c0_50, %c0_51] : memref<2x8x256xf32, #tpu.memory_space<vmem>>, vector<1x8x256xf32>
    %127 = vector.shape_cast %126 : vector<1x8x256xf32> to vector<8x256xf32>
    %128 = vector.shape_cast %125 : vector<8x256xf32> to vector<1x8x256xf32>
    tpu.vector_store %arg12[%c1, %c0_50, %c0_51], %128 {strides = array<i32>} : memref<2x8x256xf32, #tpu.memory_space<vmem>>, vector<1x8x256xf32>,
    %cst_52 = arith.constant -1.000000e+30 : f32
    %129 = vector.broadcast %cst_52 : f32 to vector<8x256xf32>
    %130 = arith.select %7, %125, %129 : vector<8x256xi1>, vector<8x256xf32>
    %c1_53 = arith.constant 1 : index
    %c0_54 = arith.constant 0 : index
    %c0_55 = arith.constant 0 : index
    %131 = vector.load %arg11[%c1_53, %c0_54, %c0_55] : memref<2x8x256xf32, #tpu.memory_space<vmem>>, vector<1x8x256xf32>
    %132 = vector.shape_cast %131 : vector<1x8x256xf32> to vector<8x256xf32>
    %133 = arith.addf %130, %132 : vector<8x256xf32>
    %cst_56 = arith.constant dense<0xFF800000> : vector<8xf32>
    %134 = vector.multi_reduction <maximumf>, %133, %cst_56 [1] : vector<8x256xf32> to vector<8xf32>
    %135 = vector.shape_cast %134 : vector<8xf32> to vector<8x1xf32>
    %136 = vector.broadcast %135 : vector<8x1xf32> to vector<8x256xf32>
    %137 = arith.cmpf oeq, %133, %136 : vector<8x256xf32>
    %cst_57 = arith.constant 2.560000e+02 : f32
    %138 = vector.broadcast %cst_57 : f32 to vector<8x256xf32>
    %139 = arith.select %137, %9, %138 : vector<8x256xi1>, vector<8x256xf32>
    %cst_58 = arith.constant dense<0x7F800000> : vector<8xf32>
    %140 = vector.multi_reduction <minimumf>, %139, %cst_58 [1] : vector<8x256xf32> to vector<8xf32>
    %141 = vector.shape_cast %140 : vector<8xf32> to vector<8x1xf32>
    %cst_59 = arith.constant 2.550000e+02 : f32
    %142 = vector.broadcast %cst_59 : f32 to vector<8x1xf32>
    %143 = arith.minimumf %141, %142 : vector<8x1xf32>
    %144 = arith.fptosi %143 : vector<8x1xf32> to vector<8x1xi32>
    %c1_60 = arith.constant 1 : index
    %c0_61 = arith.constant 0 : index
    %c0_62 = arith.constant 0 : index
    %145 = vector.load %arg13[%c1_60, %c0_61, %c0_62] : memref<2x8x1xi32, #tpu.memory_space<vmem>>, vector<1x8x1xi32>
    %146 = vector.shape_cast %145 : vector<1x8x1xi32> to vector<8x1xi32>
    %147 = vector.shape_cast %144 : vector<8x1xi32> to vector<1x8x1xi32>
    tpu.vector_store %arg13[%c1_60, %c0_61, %c0_62], %147 {strides = array<i32>} : memref<2x8x1xi32, #tpu.memory_space<vmem>>, vector<1x8x1xi32>,
    return
  }
}

</mosaic_0001>

<llo_original>
// kernel: tpu_custom_call.1
$region0: #{tpu_custom_call.1}
  #allocation0 [shape = 'u32[]', space=smem, size = 0x4, offset = 0x4, fixed_abs, tag = 'smem constant byte address 0x4 - core index']
  #allocation1 [shape = 'u32[144,128]{1,0:T(1,128)}', space=vmem, size = 0x12000, scoped, tag = 'internal scratch']
  #allocation2 [shape = 's32[1]{0:T(128)S(6)}', space=smem, size = 0x200, scoped, tag = 'scoped memory for tpu_custom_call.1']
  %s0 = inlined_call_operand.<no memory space> [shape: s32[1], index: 0, kind: input, shape index: {}]
  %s1 = inlined_call_operand.hbm [shape: f32[8,128], index: 1, kind: input, shape index: {}]
  %s2 = inlined_call_operand.hbm [shape: f32[8,128], index: 2, kind: input, shape index: {}]
  %s3 = inlined_call_operand.hbm [shape: bf16[256,384], index: 3, kind: input, shape index: {}]
  %s4 = inlined_call_operand.hbm [shape: bf16[128,384], index: 4, kind: input, shape index: {}]
  %s5 = inlined_call_operand.hbm [shape: bf16[128,384], index: 5, kind: input, shape index: {}]
  %s6 = inlined_call_operand.hbm [shape: f32[1,384], index: 6, kind: input, shape index: {}]
  %s7 = inlined_call_operand.hbm [shape: f32[1,384], index: 7, kind: input, shape index: {}]
  %s8 = inlined_call_operand.hbm [shape: bf16[128,256], index: 8, kind: input, shape index: {}]
  %s9 = inlined_call_operand.vmem [shape: f32[1,256], index: 9, kind: input, shape index: {}]
  %s10 = inlined_call_operand.vmem [shape: s32[8,256], index: 10, kind: input, shape index: {}]
  %s11 = inlined_call_operand.hbm [shape: f32[2,8,256], index: 11, kind: input, shape index: {}]
  %s12 = inlined_call_operand.hbm [shape: f32[2,8,256], index: 12, kind: output, shape index: {0}]
  %s13 = inlined_call_operand.vmem [shape: s32[2,8,1], index: 13, kind: output, shape index: {1}]
  %14 = xla_tuple %s12, %s13
  %s15 = sld [smem:[#allocation0]]
  $region102: #{tpu_custom_call.1} parent=0
    _
  %s17 = ssub.s32 1, %s15
  %s18 = scalar_select 0, %s17, %s15
  %19 = sst [smem:[#allocation2]] %s0
  $region1: #{tpu_custom_call.1} parent=0
    #allocation3 [shape = 'u8[4096]{0}', space=vmem, size = 0x1000, scoped, tag = 'input window, operand 1, single buffered']
    #allocation4 [shape = 's32[1]{0}', space=sflag, size = 0x4, scoped, tag = 'scoped memory for tpu_custom_call.1']
    #allocation5 [shape = 's32[1]{0}', space=sflag, size = 0x4, scoped, tag = 'scoped memory for tpu_custom_call.1']
    #allocation6 [shape = 'u8[4096]{0}', space=vmem, size = 0x1000, scoped, tag = 'input window, operand 2, single buffered']
    #allocation7 [shape = 's32[1]{0}', space=sflag, size = 0x4, scoped, tag = 'scoped memory for tpu_custom_call.1']
    #allocation8 [shape = 'u8[196608]{0}', space=vmem, size = 0x30000, scoped, tag = 'input window, operand 3, single buffered']
    #allocation9 [shape = 'u8[98304]{0}', space=vmem, size = 0x18000, scoped, tag = 'input window, operand 4, single buffered']
    #allocation10 [shape = 's32[1]{0}', space=sflag, size = 0x4, scoped, tag = 'scoped memory for tpu_custom_call.1']
    #allocation11 [shape = 'u8[98304]{0}', space=vmem, size = 0x18000, scoped, tag = 'input window, operand 5, single buffered']
    #allocation12 [shape = 'u8[1536]{0}', space=vmem, size = 0x800, scoped, tag = 'input window, operand 6, single buffered']
    #allocation13 [shape = 's32[1]{0}', space=sflag, size = 0x4, scoped, tag = 'scoped memory for tpu_custom_call.1']
    #allocation14 [shape = 'u8[1536]{0}', space=vmem, size = 0x800, scoped, tag = 'input window, operand 7, single buffered']
    #allocation15 [shape = 'u8[65536]{0}', space=vmem, size = 0x10000, scoped, tag = 'input window, operand 8, single buffered']
    #allocation16 [shape = 's32[1]{0}', space=sflag, size = 0x4, scoped, tag = 'scoped memory for tpu_custom_call.1']
    #allocation17 [shape = 'u8[16384]{0}', space=vmem, size = 0x4000, scoped, tag = 'input window, operand 11, single buffered']
    #allocation18 [shape = 'u8[16384]{0}', space=vmem, size = 0x4000, scoped, tag = 'output window, operand 0, single buffered']
    %20 = vsyncpa [#allocation4], 0
    %21 = vsyncpa [#allocation7], 0
    %22 = vsyncpa [#allocation10], 0
    %23 = vsyncpa [#allocation13], 0
    %24 = vsyncpa [#allocation16], 0
    %25 = vsyncpa [#allocation5], 0
    // Predicated region
    $region2: #{tpu_custom_call.1} parent=1 // pred_check
      _
    $region3: #{tpu_custom_call.1} parent=1 // pred_check_branch
      %27 = sbr.rel (0) target = $region5
    $region4: #{tpu_custom_call.1} parent=1 // pred_region
      _
    $region5: #{tpu_custom_call.1} parent=1 // pred_fallthru
      _
    // Predicated region
    $region6: #{tpu_custom_call.1} parent=1 // pred_check
      _
    $region7: #{tpu_custom_call.1} parent=1 // pred_check_branch
      %29 = sbr.rel (0) target = $region9
    $region8: #{tpu_custom_call.1} parent=1 // pred_region
      %s31 = ssub.s32 128, 128
      %32 = vsyncadd [#allocation4], %s31
      %s34 = sshll.u32 [#allocation3], 4
      %s35 = int_to_ptr.vmem [resolvable:$true] %s34
      %37 = dma.hbm_to_vmem [thread:$0]  %s1, 128, %s35, [#allocation4]
    $region9: #{tpu_custom_call.1} parent=1 // pred_fallthru
      _
    // Predicated region
    $region10: #{tpu_custom_call.1} parent=1 // pred_check
      _
    $region11: #{tpu_custom_call.1} parent=1 // pred_check_branch
      %39 = sbr.rel (0) target = $region13
    $region12: #{tpu_custom_call.1} parent=1 // pred_region
      %s41 = ssub.s32 128, 128
      %42 = vsyncadd [#allocation7], %s41
      %s44 = sshll.u32 [#allocation6], 4
      %s45 = int_to_ptr.vmem [resolvable:$true] %s44
      %47 = dma.hbm_to_vmem [thread:$0]  %s2, 128, %s45, [#allocation7]
    $region13: #{tpu_custom_call.1} parent=1 // pred_fallthru
      _
    // Predicated region
    $region14: #{tpu_custom_call.1} parent=1 // pred_check
      _
    $region15: #{tpu_custom_call.1} parent=1 // pred_check_branch
      %49 = sbr.rel (0) target = $region17
    $region16: #{tpu_custom_call.1} parent=1 // pred_region
      %s51 = ssub.s32 6144, 6144
      %52 = vsyncadd [#allocation7], %s51
      %s53 = sshll.u32 [#allocation8], 4
      %s54 = int_to_ptr.vmem [resolvable:$true] %s53
      %59 = dma.hbm_to_vmem [thread:$0]  %s3, 6144, %s54, [#allocation7], 192, 192, 12
    $region17: #{tpu_custom_call.1} parent=1 // pred_fallthru
      _
    // Predicated region
    $region18: #{tpu_custom_call.1} parent=1 // pred_check
      _
    $region19: #{tpu_custom_call.1} parent=1 // pred_check_branch
      %61 = sbr.rel (0) target = $region21
    $region20: #{tpu_custom_call.1} parent=1 // pred_region
      %s63 = ssub.s32 3072, 3072
      %64 = vsyncadd [#allocation10], %s63
      %s65 = sshll.u32 [#allocation9], 4
      %s66 = int_to_ptr.vmem [resolvable:$true] %s65
      %71 = dma.hbm_to_vmem [thread:$0]  %s4, 3072, %s66, [#allocation10], 192, 192, 12
    $region21: #{tpu_custom_call.1} parent=1 // pred_fallthru
      _
    // Predicated region
    $region22: #{tpu_custom_call.1} parent=1 // pred_check
      _
    $region23: #{tpu_custom_call.1} parent=1 // pred_check_branch
      %73 = sbr.rel (0) target = $region25
    $region24: #{tpu_custom_call.1} parent=1 // pred_region
      %s75 = ssub.s32 3072, 3072
      %76 = vsyncadd [#allocation10], %s75
      %s77 = sshll.u32 [#allocation11], 4
      %s78 = int_to_ptr.vmem [resolvable:$true] %s77
      %83 = dma.hbm_to_vmem [thread:$0]  %s5, 3072, %s78, [#allocation10], 192, 192, 12
    $region25: #{tpu_custom_call.1} parent=1 // pred_fallthru
      _
    // Predicated region
    $region26: #{tpu_custom_call.1} parent=1 // pred_check
      _
    $region27: #{tpu_custom_call.1} parent=1 // pred_check_branch
      %85 = sbr.rel (0) target = $region29
    $region28: #{tpu_custom_call.1} parent=1 // pred_region
      %s87 = ssub.s32 48, 48
      %88 = vsyncadd [#allocation13], %s87
      %s90 = sshll.u32 [#allocation12], 4
      %s91 = int_to_ptr.vmem [resolvable:$true] %s90
      %93 = dma.hbm_to_vmem [thread:$0]  %s6, 48, %s91, [#allocation13]
    $region29: #{tpu_custom_call.1} parent=1 // pred_fallthru
      _
    // Predicated region
    $region30: #{tpu_custom_call.1} parent=1 // pred_check
      _
    $region31: #{tpu_custom_call.1} parent=1 // pred_check_branch
      %95 = sbr.rel (0) target = $region33
    $region32: #{tpu_custom_call.1} parent=1 // pred_region
      %s97 = ssub.s32 48, 48
      %98 = vsyncadd [#allocation13], %s97
      %s100 = sshll.u32 [#allocation14], 4
      %s101 = int_to_ptr.vmem [resolvable:$true] %s100
      %103 = dma.hbm_to_vmem [thread:$0]  %s7, 48, %s101, [#allocation13]
    $region33: #{tpu_custom_call.1} parent=1 // pred_fallthru
      _
    // Predicated region
    $region34: #{tpu_custom_call.1} parent=1 // pred_check
      _
    $region35: #{tpu_custom_call.1} parent=1 // pred_check_branch
      %105 = sbr.rel (0) target = $region37
    $region36: #{tpu_custom_call.1} parent=1 // pred_region
      %s107 = ssub.s32 2048, 2048
      %108 = vsyncadd [#allocation16], %s107
      %s109 = sshll.u32 [#allocation15], 4
      %s110 = int_to_ptr.vmem [resolvable:$true] %s109
      %115 = dma.hbm_to_vmem [thread:$0]  %s8, 2048, %s110, [#allocation16], 128, 128, 8
    $region37: #{tpu_custom_call.1} parent=1 // pred_fallthru
      _
    // Predicated region
    $region38: #{tpu_custom_call.1} parent=1 // pred_check
      _
    $region39: #{tpu_custom_call.1} parent=1 // pred_check_branch
      %117 = sbr.rel (0) target = $region41
    $region40: #{tpu_custom_call.1} parent=1 // pred_region
      _
    $region41: #{tpu_custom_call.1} parent=1 // pred_fallthru
      _
    // Predicated region
    $region42: #{tpu_custom_call.1} parent=1 // pred_check
      _
    $region43: #{tpu_custom_call.1} parent=1 // pred_check_branch
      %119 = sbr.rel (0) target = $region45
    $region44: #{tpu_custom_call.1} parent=1 // pred_region
      _
    $region45: #{tpu_custom_call.1} parent=1 // pred_fallthru
      _
    // Predicated region
    $region46: #{tpu_custom_call.1} parent=1 // pred_check
      _
    $region47: #{tpu_custom_call.1} parent=1 // pred_check_branch
      %121 = sbr.rel (0) target = $region49
    $region48: #{tpu_custom_call.1} parent=1 // pred_region
      %s123 = ssub.s32 512, 512
      %124 = vsyncadd [#allocation16], %s123
      %s125 = sshll.u32 [#allocation17], 4
      %s126 = int_to_ptr.vmem [resolvable:$true] %s125
      %131 = dma.hbm_to_vmem [thread:$0]  %s11, 512, %s126, [#allocation16], 256, 256, 16
    $region49: #{tpu_custom_call.1} parent=1 // pred_fallthru
      _
    // Predicated region
    $region50: #{tpu_custom_call.1} parent=1 // pred_check
      _
    $region51: #{tpu_custom_call.1} parent=1 // pred_check_branch
      %133 = sbr.rel (0) target = $region53
    $region52: #{tpu_custom_call.1} parent=1 // pred_region
      %134 = dma.done [#allocation4], 128
    $region53: #{tpu_custom_call.1} parent=1 // pred_fallthru
      _
    // Predicated region
    $region54: #{tpu_custom_call.1} parent=1 // pred_check
      _
    $region55: #{tpu_custom_call.1} parent=1 // pred_check_branch
      %136 = sbr.rel (0) target = $region57
    $region56: #{tpu_custom_call.1} parent=1 // pred_region
      %137 = dma.done [#allocation7], 128
    $region57: #{tpu_custom_call.1} parent=1 // pred_fallthru
      _
    // Predicated region
    $region58: #{tpu_custom_call.1} parent=1 // pred_check
      _
    $region59: #{tpu_custom_call.1} parent=1 // pred_check_branch
      %139 = sbr.rel (0) target = $region61
    $region60: #{tpu_custom_call.1} parent=1 // pred_region
      %140 = dma.done [#allocation7], 6144
    $region61: #{tpu_custom_call.1} parent=1 // pred_fallthru
      _
    // Predicated region
    $region62: #{tpu_custom_call.1} parent=1 // pred_check
      _
    $region63: #{tpu_custom_call.1} parent=1 // pred_check_branch
      %142 = sbr.rel (0) target = $region65
    $region64: #{tpu_custom_call.1} parent=1 // pred_region
      %143 = dma.done [#allocation10], 3072
    $region65: #{tpu_custom_call.1} parent=1 // pred_fallthru
      _
    // Predicated region
    $region66: #{tpu_custom_call.1} parent=1 // pred_check
      _
    $region67: #{tpu_custom_call.1} parent=1 // pred_check_branch
      %145 = sbr.rel (0) target = $region69
    $region68: #{tpu_custom_call.1} parent=1 // pred_region
      %146 = dma.done [#allocation10], 3072
    $region69: #{tpu_custom_call.1} parent=1 // pred_fallthru
      _
    // Predicated region
    $region70: #{tpu_custom_call.1} parent=1 // pred_check
      _
    $region71: #{tpu_custom_call.1} parent=1 // pred_check_branch
      %148 = sbr.rel (0) target = $region73
    $region72: #{tpu_custom_call.1} parent=1 // pred_region
      %149 = dma.done [#allocation13], 48
    $region73: #{tpu_custom_call.1} parent=1 // pred_fallthru
      _
    // Predicated region
    $region74: #{tpu_custom_call.1} parent=1 // pred_check
      _
    $region75: #{tpu_custom_call.1} parent=1 // pred_check_branch
      %151 = sbr.rel (0) target = $region77
    $region76: #{tpu_custom_call.1} parent=1 // pred_region
      %152 = dma.done [#allocation13], 48
    $region77: #{tpu_custom_call.1} parent=1 // pred_fallthru
      _
    // Predicated region
    $region78: #{tpu_custom_call.1} parent=1 // pred_check
      _
    $region79: #{tpu_custom_call.1} parent=1 // pred_check_branch
      %154 = sbr.rel (0) target = $region81
    $region80: #{tpu_custom_call.1} parent=1 // pred_region
      %155 = dma.done [#allocation16], 2048
    $region81: #{tpu_custom_call.1} parent=1 // pred_fallthru
      _
    // Predicated region
    $region82: #{tpu_custom_call.1} parent=1 // pred_check
      _
    $region83: #{tpu_custom_call.1} parent=1 // pred_check_branch
      %157 = sbr.rel (0) target = $region85
    $region84: #{tpu_custom_call.1} parent=1 // pred_region
      %158 = dma.done [#allocation16], 512
    $region85: #{tpu_custom_call.1} parent=1 // pred_fallthru
      _
    %v160 = vld [vmem:[#allocation8] sm:$0xff]
    %v161 = vld [vmem:[#allocation8 + $0x8] sm:$0xf]
    %v162 = vld [vmem:[#allocation8 + $0xc] sm:$0xff]
    %v163 = vld [vmem:[#allocation8 + $0x14] sm:$0xf]
    %v164 = vld [vmem:[#allocation8 + $0x18] sm:$0xff]
    %v165 = vld [vmem:[#allocation8 + $0x20] sm:$0xf]
    %v166 = vld [vmem:[#allocation8 + $0x24] sm:$0xff]
    %v167 = vld [vmem:[#allocation8 + $0x2c] sm:$0xf]
    %v168 = vld [vmem:[#allocation8 + $0x30] sm:$0xff]
    %v169 = vld [vmem:[#allocation8 + $0x38] sm:$0xf]
    %v170 = vld [vmem:[#allocation8 + $0x3c] sm:$0xff]
    %v171 = vld [vmem:[#allocation8 + $0x44] sm:$0xf]
    %v172 = vld [vmem:[#allocation8 + $0x48] sm:$0xff]
    %v173 = vld [vmem:[#allocation8 + $0x50] sm:$0xf]
    %v174 = vld [vmem:[#allocation8 + $0x54] sm:$0xff]
    %v175 = vld [vmem:[#allocation8 + $0x5c] sm:$0xf]
    %v176 = vld [vmem:[#allocation8 + $0x60] sm:$0xff]
    %v177 = vld [vmem:[#allocation8 + $0x68] sm:$0xf]
    %v178 = vld [vmem:[#allocation8 + $0x6c] sm:$0xff]
    %v179 = vld [vmem:[#allocation8 + $0x74] sm:$0xf]
    %v180 = vld [vmem:[#allocation8 + $0x78] sm:$0xff]
    %v181 = vld [vmem:[#allocation8 + $0x80] sm:$0xf]
    %v182 = vld [vmem:[#allocation8 + $0x84] sm:$0xff]
    %v183 = vld [vmem:[#allocation8 + $0x8c] sm:$0xf]
    %v184 = vld [vmem:[#allocation8 + $0x90] sm:$0xff]
    %v185 = vld [vmem:[#allocation8 + $0x98] sm:$0xf]
    %v186 = vld [vmem:[#allocation8 + $0x9c] sm:$0xff]
    %v187 = vld [vmem:[#allocation8 + $0xa4] sm:$0xf]
    %v188 = vld [vmem:[#allocation8 + $0xa8] sm:$0xff]
    %v189 = vld [vmem:[#allocation8 + $0xb0] sm:$0xf]
    %v190 = vld [vmem:[#allocation8 + $0xb4] sm:$0xff]
    %v191 = vld [vmem:[#allocation8 + $0xbc] sm:$0xf]
    %v192 = vld [vmem:[#allocation8 + $0xc0] sm:$0xff]
    %v193 = vld [vmem:[#allocation8 + $0xc8] sm:$0xf]
    %v194 = vld [vmem:[#allocation8 + $0xcc] sm:$0xff]
    %v195 = vld [vmem:[#allocation8 + $0xd4] sm:$0xf]
    %v196 = vld [vmem:[#allocation8 + $0xd8] sm:$0xff]
    %v197 = vld [vmem:[#allocation8 + $0xe0] sm:$0xf]
    %v198 = vld [vmem:[#allocation8 + $0xe4] sm:$0xff]
    %v199 = vld [vmem:[#allocation8 + $0xec] sm:$0xf]
    %v200 = vld [vmem:[#allocation8 + $0xf0] sm:$0xff]
    %v201 = vld [vmem:[#allocation8 + $0xf8] sm:$0xf]
    %v202 = vld [vmem:[#allocation8 + $0xfc] sm:$0xff]
    %v203 = vld [vmem:[#allocation8 + $0x104] sm:$0xf]
    %v204 = vld [vmem:[#allocation8 + $0x108] sm:$0xff]
    %v205 = vld [vmem:[#allocation8 + $0x110] sm:$0xf]
    %v206 = vld [vmem:[#allocation8 + $0x114] sm:$0xff]
    %v207 = vld [vmem:[#allocation8 + $0x11c] sm:$0xf]
    %v208 = vld [vmem:[#allocation8 + $0x120] sm:$0xff]
    %v209 = vld [vmem:[#allocation8 + $0x128] sm:$0xf]
    %v210 = vld [vmem:[#allocation8 + $0x12c] sm:$0xff]
    %v211 = vld [vmem:[#allocation8 + $0x134] sm:$0xf]
    %v212 = vld [vmem:[#allocation8 + $0x138] sm:$0xff]
    %v213 = vld [vmem:[#allocation8 + $0x140] sm:$0xf]
    %v214 = vld [vmem:[#allocation8 + $0x144] sm:$0xff]
    %v215 = vld [vmem:[#allocation8 + $0x14c] sm:$0xf]
    %v216 = vld [vmem:[#allocation8 + $0x150] sm:$0xff]
    %v217 = vld [vmem:[#allocation8 + $0x158] sm:$0xf]
    %v218 = vld [vmem:[#allocation8 + $0x15c] sm:$0xff]
    %v219 = vld [vmem:[#allocation8 + $0x164] sm:$0xf]
    %v220 = vld [vmem:[#allocation8 + $0x168] sm:$0xff]
    %v221 = vld [vmem:[#allocation8 + $0x170] sm:$0xf]
    %v222 = vld [vmem:[#allocation8 + $0x174] sm:$0xff]
    %v223 = vld [vmem:[#allocation8 + $0x17c] sm:$0xf]
    %v224 = vld [vmem:[#allocation11] sm:$0xff]
    %v225 = vld [vmem:[#allocation11 + $0x8] sm:$0xf]
    %v226 = vld [vmem:[#allocation11 + $0xc] sm:$0xff]
    %v227 = vld [vmem:[#allocation11 + $0x14] sm:$0xf]
    %v228 = vld [vmem:[#allocation11 + $0x18] sm:$0xff]
    %v229 = vld [vmem:[#allocation11 + $0x20] sm:$0xf]
    %v230 = vld [vmem:[#allocation11 + $0x24] sm:$0xff]
    %v231 = vld [vmem:[#allocation11 + $0x2c] sm:$0xf]
    %v232 = vld [vmem:[#allocation11 + $0x30] sm:$0xff]
    %v233 = vld [vmem:[#allocation11 + $0x38] sm:$0xf]
    %v234 = vld [vmem:[#allocation11 + $0x3c] sm:$0xff]
    %v235 = vld [vmem:[#allocation11 + $0x44] sm:$0xf]
    %v236 = vld [vmem:[#allocation11 + $0x48] sm:$0xff]
    %v237 = vld [vmem:[#allocation11 + $0x50] sm:$0xf]
    %v238 = vld [vmem:[#allocation11 + $0x54] sm:$0xff]
    %v239 = vld [vmem:[#allocation11 + $0x5c] sm:$0xf]
    %v240 = vld [vmem:[#allocation11 + $0x60] sm:$0xff]
    %v241 = vld [vmem:[#allocation11 + $0x68] sm:$0xf]
    %v242 = vld [vmem:[#allocation11 + $0x6c] sm:$0xff]
    %v243 = vld [vmem:[#allocation11 + $0x74] sm:$0xf]
    %v244 = vld [vmem:[#allocation11 + $0x78] sm:$0xff]
    %v245 = vld [vmem:[#allocation11 + $0x80] sm:$0xf]
    %v246 = vld [vmem:[#allocation11 + $0x84] sm:$0xff]
    %v247 = vld [vmem:[#allocation11 + $0x8c] sm:$0xf]
    %v248 = vld [vmem:[#allocation11 + $0x90] sm:$0xff]
    %v249 = vld [vmem:[#allocation11 + $0x98] sm:$0xf]
    %v250 = vld [vmem:[#allocation11 + $0x9c] sm:$0xff]
    %v251 = vld [vmem:[#allocation11 + $0xa4] sm:$0xf]
    %v252 = vld [vmem:[#allocation11 + $0xa8] sm:$0xff]
    %v253 = vld [vmem:[#allocation11 + $0xb0] sm:$0xf]
    %v254 = vld [vmem:[#allocation11 + $0xb4] sm:$0xff]
    %v255 = vld [vmem:[#allocation11 + $0xbc] sm:$0xf]
    %v256 = vld [vmem:[#allocation15] sm:$0xff]
    %v257 = vld [vmem:[#allocation15 + $0x8] sm:$0xff]
    %v258 = vld [vmem:[#allocation15 + $0x10] sm:$0xff]
    %v259 = vld [vmem:[#allocation15 + $0x18] sm:$0xff]
    %v260 = vld [vmem:[#allocation15 + $0x20] sm:$0xff]
    %v261 = vld [vmem:[#allocation15 + $0x28] sm:$0xff]
    %v262 = vld [vmem:[#allocation15 + $0x30] sm:$0xff]
    %v263 = vld [vmem:[#allocation15 + $0x38] sm:$0xff]
    %v264 = vld [vmem:[#allocation15 + $0x40] sm:$0xff]
    %v265 = vld [vmem:[#allocation15 + $0x48] sm:$0xff]
    %v266 = vld [vmem:[#allocation15 + $0x50] sm:$0xff]
    %v267 = vld [vmem:[#allocation15 + $0x58] sm:$0xff]
    %v268 = vld [vmem:[#allocation15 + $0x60] sm:$0xff]
    %v269 = vld [vmem:[#allocation15 + $0x68] sm:$0xff]
    %v270 = vld [vmem:[#allocation15 + $0x70] sm:$0xff]
    %v271 = vld [vmem:[#allocation15 + $0x78] sm:$0xff]
    %v272 = vld [vmem:[#allocation14] sm:$0x7]
    %v273 = vld [vmem:[%s9] sm:$0x3]
    %v274 = vld [vmem:[%s10] sm:$0xff]
    %v275 = vld [vmem:[%s10 + $0x8] sm:$0xff]
    %vm276 = vcmp.gt.s32.totalorder %v274, 0
    %vm277 = vcmp.gt.s32.totalorder %v275, 0
    %v278 = vlaneseq
    %v279 = vand.u32 %v278, 127
    %v280 = vadd.s32 %v279, 128
    %v281 = vcvt.s32.f32 %v279
    %v282 = vcvt.s32.f32 %v280
    %v283 = vld [vmem:[#allocation3] sm:$0xff]
    %v284 = vpack.c.bf16 %v283, %v283
    %v285 = vld [vmem:[#allocation9] sm:$0xff]
    %v286 = vld [vmem:[#allocation9 + $0x8] sm:$0xf]
    %v287 = vld [vmem:[#allocation9 + $0xc] sm:$0xff]
    %v288 = vld [vmem:[#allocation9 + $0x14] sm:$0xf]
    %v289 = vld [vmem:[#allocation9 + $0x18] sm:$0xff]
    %v290 = vld [vmem:[#allocation9 + $0x20] sm:$0xf]
    %v291 = vld [vmem:[#allocation9 + $0x24] sm:$0xff]
    %v292 = vld [vmem:[#allocation9 + $0x2c] sm:$0xf]
    %v293 = vld [vmem:[#allocation9 + $0x30] sm:$0xff]
    %v294 = vld [vmem:[#allocation9 + $0x38] sm:$0xf]
    %v295 = vld [vmem:[#allocation9 + $0x3c] sm:$0xff]
    %v296 = vld [vmem:[#allocation9 + $0x44] sm:$0xf]
    %v297 = vld [vmem:[#allocation9 + $0x48] sm:$0xff]
    %v298 = vld [vmem:[#allocation9 + $0x50] sm:$0xf]
    %v299 = vld [vmem:[#allocation9 + $0x54] sm:$0xff]
    %v300 = vld [vmem:[#allocation9 + $0x5c] sm:$0xf]
    %v301 = vld [vmem:[#allocation9 + $0x60] sm:$0xff]
    %v302 = vld [vmem:[#allocation9 + $0x68] sm:$0xf]
    %v303 = vld [vmem:[#allocation9 + $0x6c] sm:$0xff]
    %v304 = vld [vmem:[#allocation9 + $0x74] sm:$0xf]
    %v305 = vld [vmem:[#allocation9 + $0x78] sm:$0xff]
    %v306 = vld [vmem:[#allocation9 + $0x80] sm:$0xf]
    %v307 = vld [vmem:[#allocation9 + $0x84] sm:$0xff]
    %v308 = vld [vmem:[#allocation9 + $0x8c] sm:$0xf]
    %v309 = vld [vmem:[#allocation9 + $0x90] sm:$0xff]
    %v310 = vld [vmem:[#allocation9 + $0x98] sm:$0xf]
    %v311 = vld [vmem:[#allocation9 + $0x9c] sm:$0xff]
    %v312 = vld [vmem:[#allocation9 + $0xa4] sm:$0xf]
    %v313 = vld [vmem:[#allocation9 + $0xa8] sm:$0xff]
    %v314 = vld [vmem:[#allocation9 + $0xb0] sm:$0xf]
    %v315 = vld [vmem:[#allocation9 + $0xb4] sm:$0xff]
    %v316 = vld [vmem:[#allocation9 + $0xbc] sm:$0xf]
    %v317 = vld [vmem:[#allocation12] sm:$0x7]
    %v319 = vlaneseq
    %v320 = vshrl.u32 %v319, 7
    %v321 = vsub.s32 0, %v320
    %v322 = vrot.slane %v317, %v321
    %v323 = vlaneseq
    %v324 = vshrl.u32 %v323, 7
    %v325 = vsub.s32 1, %v324
    %v326 = vrot.slane %v317, %v325
    %v327 = vlaneseq
    %v328 = vshrl.u32 %v327, 7
    %v329 = vsub.s32 2, %v328
    %v330 = vrot.slane %v317, %v329
    %v366 = vunpack.c.l.b16 %v285
    %v367 = vunpack.c.h.b16 %v285
    %v368 = vunpack.c.l.b16 %v286
    %v369 = vunpack.c.l.b16 %v287
    %v370 = vunpack.c.h.b16 %v287
    %v371 = vunpack.c.l.b16 %v288
    %v372 = vunpack.c.l.b16 %v289
    %v373 = vunpack.c.h.b16 %v289
    %v374 = vunpack.c.l.b16 %v290
    %v375 = vunpack.c.l.b16 %v291
    %v376 = vunpack.c.h.b16 %v291
    %v377 = vunpack.c.l.b16 %v292
    %v378 = vunpack.c.l.b16 %v293
    %v379 = vunpack.c.h.b16 %v293
    %v380 = vunpack.c.l.b16 %v294
    %v381 = vunpack.c.l.b16 %v295
    %v382 = vunpack.c.h.b16 %v295
    %v383 = vunpack.c.l.b16 %v296
    %v384 = vunpack.c.l.b16 %v297
    %v385 = vunpack.c.h.b16 %v297
    %v386 = vunpack.c.l.b16 %v298
    %v387 = vunpack.c.l.b16 %v299
    %v388 = vunpack.c.h.b16 %v299
    %v389 = vunpack.c.l.b16 %v300
    %v390 = vunpack.c.l.b16 %v301
    %v391 = vunpack.c.h.b16 %v301
    %v392 = vunpack.c.l.b16 %v302
    %v393 = vunpack.c.l.b16 %v303
    %v394 = vunpack.c.h.b16 %v303
    %v395 = vunpack.c.l.b16 %v304
    %v396 = vunpack.c.l.b16 %v305
    %v397 = vunpack.c.h.b16 %v305
    %v398 = vunpack.c.l.b16 %v306
    %v399 = vunpack.c.l.b16 %v307
    %v400 = vunpack.c.h.b16 %v307
    %v401 = vunpack.c.l.b16 %v308
    %v402 = vunpack.c.l.b16 %v309
    %v403 = vunpack.c.h.b16 %v309
    %v404 = vunpack.c.l.b16 %v310
    %v405 = vunpack.c.l.b16 %v311
    %v406 = vunpack.c.h.b16 %v311
    %v407 = vunpack.c.l.b16 %v312
    %v408 = vunpack.c.l.b16 %v313
    %v409 = vunpack.c.h.b16 %v313
    %v410 = vunpack.c.l.b16 %v314
    %v411 = vunpack.c.l.b16 %v315
    %v412 = vunpack.c.h.b16 %v315
    %v413 = vunpack.c.l.b16 %v316
    %v414 = vpack.c.b16 %v369, %v366
    %v415 = vpack.c.b16 %v370, %v367
    %v416 = vpack.c.b16 %v371, %v368
    %v417 = vpack.c.b16 %v375, %v372
    %v418 = vpack.c.b16 %v376, %v373
    %v419 = vpack.c.b16 %v377, %v374
    %v420 = vpack.c.b16 %v381, %v378
    %v421 = vpack.c.b16 %v382, %v379
    %v422 = vpack.c.b16 %v383, %v380
    %v423 = vpack.c.b16 %v387, %v384
    %v424 = vpack.c.b16 %v388, %v385
    %v425 = vpack.c.b16 %v389, %v386
    %v426 = vpack.c.b16 %v393, %v390
    %v427 = vpack.c.b16 %v394, %v391
    %v428 = vpack.c.b16 %v395, %v392
    %v429 = vpack.c.b16 %v399, %v396
    %v430 = vpack.c.b16 %v400, %v397
    %v431 = vpack.c.b16 %v401, %v398
    %v432 = vpack.c.b16 %v405, %v402
    %v433 = vpack.c.b16 %v406, %v403
    %v434 = vpack.c.b16 %v407, %v404
    %v435 = vpack.c.b16 %v411, %v408
    %v436 = vpack.c.b16 %v412, %v409
    %v437 = vpack.c.b16 %v413, %v410
    %462 = vmatprep.subr.bf16.mxu0 %v436
    %463 = vmatpush1.bf16.msra.mxu0 %v435
    %464 = vmatprep.subr.bf16.mxu0 %v433
    %465 = vmatpush1.bf16.msra.mxu0 %v432
    %466 = vmatprep.subr.bf16.mxu0 %v430
    %467 = vmatpush1.bf16.msra.mxu0 %v429
    %468 = vmatprep.subr.bf16.mxu0 %v427
    %469 = vmatpush1.bf16.msra.mxu0 %v426
    %470 = vmatprep.subr.bf16.mxu0 %v424
    %471 = vmatpush1.bf16.msra.mxu0 %v423
    %472 = vmatprep.subr.bf16.mxu0 %v421
    %473 = vmatpush1.bf16.msra.mxu0 %v420
    %474 = vmatprep.subr.bf16.mxu0 %v418
    %475 = vmatpush1.bf16.msra.mxu0 %v417
    %476 = vmatprep.subr.bf16.mxu0 %v415
    %477 = vmatpush1.bf16.msra.mxu0 %v414
    %478 = vmatprep.subr.bf16.mxu0 0
    %479 = vmatpush2.bf16.msra.mxu0 0
    %480 = vmatprep.subr.bf16.mxu0 0
    %481 = vmatpush2.bf16.msra.mxu0 0
    %482 = vmatprep.subr.bf16.mxu0 0
    %483 = vmatpush2.bf16.msra.mxu0 0
    %484 = vmatprep.subr.bf16.mxu0 0
    %485 = vmatpush2.bf16.msra.mxu0 0
    %486 = vmatprep.subr.bf16.mxu0 0
    %487 = vmatpush2.bf16.msra.mxu0 0
    %488 = vmatprep.subr.bf16.mxu0 0
    %489 = vmatpush2.bf16.msra.mxu0 0
    %490 = vmatprep.subr.bf16.mxu0 0
    %491 = vmatpush2.bf16.msra.mxu0 0
    %492 = vmatprep.subr.bf16.mxu0 0
    %493 = vmatpush2.bf16.msra.mxu0 0
    %494 = vmatprep.mubr.bf16.mxu0 0
    %495 = vmatmul.mubr.bf16.gmra.mxu0 %v284
    %v496 = vpop.f32.mrf.mxu0
    %v497 = vadd.f32 %v322, %v496
    %v498 = vpop.f32.mrf.mxu0
    %v499 = vadd.f32 %v326, %v498
    %v500 = vpop.f32.mrf.mxu0
    %v501 = vpop.f32.mrf.mxu0
    %502 = vdwg.mxu0
    %503 = vmatprep.subr.bf16.mxu0 0
    %504 = vmatpush1.bf16.msra.mxu0 %v437
    %505 = vmatprep.subr.bf16.mxu0 0
    %506 = vmatpush1.bf16.msra.mxu0 %v434
    %507 = vmatprep.subr.bf16.mxu0 0
    %508 = vmatpush1.bf16.msra.mxu0 %v431
    %509 = vmatprep.subr.bf16.mxu0 0
    %510 = vmatpush1.bf16.msra.mxu0 %v428
    %511 = vmatprep.subr.bf16.mxu0 0
    %512 = vmatpush1.bf16.msra.mxu0 %v425
    %513 = vmatprep.subr.bf16.mxu0 0
    %514 = vmatpush1.bf16.msra.mxu0 %v422
    %515 = vmatprep.subr.bf16.mxu0 0
    %516 = vmatpush1.bf16.msra.mxu0 %v419
    %517 = vmatprep.subr.bf16.mxu0 0
    %518 = vmatpush1.bf16.msra.mxu0 %v416
    %519 = vmatprep.subr.bf16.mxu0 0
    %520 = vmatpush2.bf16.msra.mxu0 0
    %521 = vmatprep.subr.bf16.mxu0 0
    %522 = vmatpush2.bf16.msra.mxu0 0
    %523 = vmatprep.subr.bf16.mxu0 0
    %524 = vmatpush2.bf16.msra.mxu0 0
    %525 = vmatprep.subr.bf16.mxu0 0
    %526 = vmatpush2.bf16.msra.mxu0 0
    %527 = vmatprep.subr.bf16.mxu0 0
    %528 = vmatpush2.bf16.msra.mxu0 0
    %529 = vmatprep.subr.bf16.mxu0 0
    %530 = vmatpush2.bf16.msra.mxu0 0
    %531 = vmatprep.subr.bf16.mxu0 0
    %532 = vmatpush2.bf16.msra.mxu0 0
    %533 = vmatprep.subr.bf16.mxu0 0
    %534 = vmatpush2.bf16.msra.mxu0 0
    %535 = vmatprep.mubr.bf16.mxu0 0
    %536 = vmatmul.mubr.bf16.gmra.mxu0 %v284
    %v537 = vpop.f32.mrf.mxu0
    %v538 = vadd.f32 %v330, %v537
    %v539 = vpop.f32.mrf.mxu0
    %v540 = vpop.f32.mrf.mxu0
    %v541 = vpop.f32.mrf.mxu0
    %542 = vdwg.mxu0
    %v543 = vld [vmem:[#allocation6] sm:$0xff]
    %s544 = sld [smem:[#allocation2]]
    %v545 = vstv %s544
    %vm546 = vcmp.eq.s32.totalorder %v279, %v545
    %vm547 = vcmp.eq.s32.totalorder %v280, %v545
    %v548 = vsel %vm546, 1.0, 0.0
    %v549 = vsel %vm547, 1.0, 0.0
    %v550 = vpack.c.bf16 %v548, %v548
    %v551 = vpack.c.bf16 %v549, %v549
    %v616 = vunpack.c.l.b16 %v160
    %v617 = vunpack.c.h.b16 %v160
    %v618 = vunpack.c.l.b16 %v161
    %v619 = vunpack.c.l.b16 %v162
    %v620 = vunpack.c.h.b16 %v162
    %v621 = vunpack.c.l.b16 %v163
    %v622 = vunpack.c.l.b16 %v164
    %v623 = vunpack.c.h.b16 %v164
    %v624 = vunpack.c.l.b16 %v165
    %v625 = vunpack.c.l.b16 %v166
    %v626 = vunpack.c.h.b16 %v166
    %v627 = vunpack.c.l.b16 %v167
    %v628 = vunpack.c.l.b16 %v168
    %v629 = vunpack.c.h.b16 %v168
    %v630 = vunpack.c.l.b16 %v169
    %v631 = vunpack.c.l.b16 %v170
    %v632 = vunpack.c.h.b16 %v170
    %v633 = vunpack.c.l.b16 %v171
    %v634 = vunpack.c.l.b16 %v172
    %v635 = vunpack.c.h.b16 %v172
    %v636 = vunpack.c.l.b16 %v173
    %v637 = vunpack.c.l.b16 %v174
    %v638 = vunpack.c.h.b16 %v174
    %v639 = vunpack.c.l.b16 %v175
    %v640 = vunpack.c.l.b16 %v176
    %v641 = vunpack.c.h.b16 %v176
    %v642 = vunpack.c.l.b16 %v177
    %v643 = vunpack.c.l.b16 %v178
    %v644 = vunpack.c.h.b16 %v178
    %v645 = vunpack.c.l.b16 %v179
    %v646 = vunpack.c.l.b16 %v180
    %v647 = vunpack.c.h.b16 %v180
    %v648 = vunpack.c.l.b16 %v181
    %v649 = vunpack.c.l.b16 %v182
    %v650 = vunpack.c.h.b16 %v182
    %v651 = vunpack.c.l.b16 %v183
    %v652 = vunpack.c.l.b16 %v184
    %v653 = vunpack.c.h.b16 %v184
    %v654 = vunpack.c.l.b16 %v185
    %v655 = vunpack.c.l.b16 %v186
    %v656 = vunpack.c.h.b16 %v186
    %v657 = vunpack.c.l.b16 %v187
    %v658 = vunpack.c.l.b16 %v188
    %v659 = vunpack.c.h.b16 %v188
    %v660 = vunpack.c.l.b16 %v189
    %v661 = vunpack.c.l.b16 %v190
    %v662 = vunpack.c.h.b16 %v190
    %v663 = vunpack.c.l.b16 %v191
    %v664 = vunpack.c.l.b16 %v192
    %v665 = vunpack.c.h.b16 %v192
    %v666 = vunpack.c.l.b16 %v193
    %v667 = vunpack.c.l.b16 %v194
    %v668 = vunpack.c.h.b16 %v194
    %v669 = vunpack.c.l.b16 %v195
    %v670 = vunpack.c.l.b16 %v196
    %v671 = vunpack.c.h.b16 %v196
    %v672 = vunpack.c.l.b16 %v197
    %v673 = vunpack.c.l.b16 %v198
    %v674 = vunpack.c.h.b16 %v198
    %v675 = vunpack.c.l.b16 %v199
    %v676 = vunpack.c.l.b16 %v200
    %v677 = vunpack.c.h.b16 %v200
    %v678 = vunpack.c.l.b16 %v201
    %v679 = vunpack.c.l.b16 %v202
    %v680 = vunpack.c.h.b16 %v202
    %v681 = vunpack.c.l.b16 %v203
    %v682 = vunpack.c.l.b16 %v204
    %v683 = vunpack.c.h.b16 %v204
    %v684 = vunpack.c.l.b16 %v205
    %v685 = vunpack.c.l.b16 %v206
    %v686 = vunpack.c.h.b16 %v206
    %v687 = vunpack.c.l.b16 %v207
    %v688 = vunpack.c.l.b16 %v208
    %v689 = vunpack.c.h.b16 %v208
    %v690 = vunpack.c.l.b16 %v209
    %v691 = vunpack.c.l.b16 %v210
    %v692 = vunpack.c.h.b16 %v210
    %v693 = vunpack.c.l.b16 %v211
    %v694 = vunpack.c.l.b16 %v212
    %v695 = vunpack.c.h.b16 %v212
    %v696 = vunpack.c.l.b16 %v213
    %v697 = vunpack.c.l.b16 %v214
    %v698 = vunpack.c.h.b16 %v214
    %v699 = vunpack.c.l.b16 %v215
    %v700 = vunpack.c.l.b16 %v216
    %v701 = vunpack.c.h.b16 %v216
    %v702 = vunpack.c.l.b16 %v217
    %v703 = vunpack.c.l.b16 %v218
    %v704 = vunpack.c.h.b16 %v218
    %v705 = vunpack.c.l.b16 %v219
    %v706 = vunpack.c.l.b16 %v220
    %v707 = vunpack.c.h.b16 %v220
    %v708 = vunpack.c.l.b16 %v221
    %v709 = vunpack.c.l.b16 %v222
    %v710 = vunpack.c.h.b16 %v222
    %v711 = vunpack.c.l.b16 %v223
    %v712 = vpack.c.b16 %v619, %v616
    %v713 = vpack.c.b16 %v620, %v617
    %v714 = vpack.c.b16 %v621, %v618
    %v715 = vpack.c.b16 %v625, %v622
    %v716 = vpack.c.b16 %v626, %v623
    %v717 = vpack.c.b16 %v627, %v624
    %v718 = vpack.c.b16 %v631, %v628
    %v719 = vpack.c.b16 %v632, %v629
    %v720 = vpack.c.b16 %v633, %v630
    %v721 = vpack.c.b16 %v637, %v634
    %v722 = vpack.c.b16 %v638, %v635
    %v723 = vpack.c.b16 %v639, %v636
    %v724 = vpack.c.b16 %v643, %v640
    %v725 = vpack.c.b16 %v644, %v641
    %v726 = vpack.c.b16 %v645, %v642
    %v727 = vpack.c.b16 %v649, %v646
    %v728 = vpack.c.b16 %v650, %v647
    %v729 = vpack.c.b16 %v651, %v648
    %v730 = vpack.c.b16 %v655, %v652
    %v731 = vpack.c.b16 %v656, %v653
    %v732 = vpack.c.b16 %v657, %v654
    %v733 = vpack.c.b16 %v661, %v658
    %v734 = vpack.c.b16 %v662, %v659
    %v735 = vpack.c.b16 %v663, %v660
    %v736 = vpack.c.b16 %v667, %v664
    %v737 = vpack.c.b16 %v668, %v665
    %v738 = vpack.c.b16 %v669, %v666
    %v739 = vpack.c.b16 %v673, %v670
    %v740 = vpack.c.b16 %v674, %v671
    %v741 = vpack.c.b16 %v675, %v672
    %v742 = vpack.c.b16 %v679, %v676
    %v743 = vpack.c.b16 %v680, %v677
    %v744 = vpack.c.b16 %v681, %v678
    %v745 = vpack.c.b16 %v685, %v682
    %v746 = vpack.c.b16 %v686, %v683
    %v747 = vpack.c.b16 %v687, %v684
    %v748 = vpack.c.b16 %v691, %v688
    %v749 = vpack.c.b16 %v692, %v689
    %v750 = vpack.c.b16 %v693, %v690
    %v751 = vpack.c.b16 %v697, %v694
    %v752 = vpack.c.b16 %v698, %v695
    %v753 = vpack.c.b16 %v699, %v696
    %v754 = vpack.c.b16 %v703, %v700
    %v755 = vpack.c.b16 %v704, %v701
    %v756 = vpack.c.b16 %v705, %v702
    %v757 = vpack.c.b16 %v709, %v706
    %v758 = vpack.c.b16 %v710, %v707
    %v759 = vpack.c.b16 %v711, %v708
    %808 = vmatprep.subr.bf16.mxu0 %v734
    %809 = vmatpush1.bf16.msra.mxu0 %v733
    %810 = vmatprep.subr.bf16.mxu0 %v731
    %811 = vmatpush1.bf16.msra.mxu0 %v730
    %812 = vmatprep.subr.bf16.mxu0 %v728
    %813 = vmatpush1.bf16.msra.mxu0 %v727
    %814 = vmatprep.subr.bf16.mxu0 %v725
    %815 = vmatpush1.bf16.msra.mxu0 %v724
    %816 = vmatprep.subr.bf16.mxu0 %v722
    %817 = vmatpush1.bf16.msra.mxu0 %v721
    %818 = vmatprep.subr.bf16.mxu0 %v719
    %819 = vmatpush1.bf16.msra.mxu0 %v718
    %820 = vmatprep.subr.bf16.mxu0 %v716
    %821 = vmatpush1.bf16.msra.mxu0 %v715
    %822 = vmatprep.subr.bf16.mxu0 %v713
    %823 = vmatpush1.bf16.msra.mxu0 %v712
    %824 = vmatprep.subr.bf16.mxu0 %v758
    %825 = vmatpush2.bf16.msra.mxu0 %v757
    %826 = vmatprep.subr.bf16.mxu0 %v755
    %827 = vmatpush2.bf16.msra.mxu0 %v754
    %828 = vmatprep.subr.bf16.mxu0 %v752
    %829 = vmatpush2.bf16.msra.mxu0 %v751
    %830 = vmatprep.subr.bf16.mxu0 %v749
    %831 = vmatpush2.bf16.msra.mxu0 %v748
    %832 = vmatprep.subr.bf16.mxu0 %v746
    %833 = vmatpush2.bf16.msra.mxu0 %v745
    %834 = vmatprep.subr.bf16.mxu0 %v743
    %835 = vmatpush2.bf16.msra.mxu0 %v742
    %836 = vmatprep.subr.bf16.mxu0 %v740
    %837 = vmatpush2.bf16.msra.mxu0 %v739
    %838 = vmatprep.subr.bf16.mxu0 %v737
    %839 = vmatpush2.bf16.msra.mxu0 %v736
    %840 = vmatprep.mubr.bf16.mxu0 %v551
    %841 = vmatmul.mubr.bf16.gmra.mxu0 %v550
    %v842 = vpop.f32.mrf.mxu0
    %v843 = vadd.f32 %v497, %v842
    %v844 = vpop.f32.mrf.mxu0
    %v845 = vadd.f32 %v499, %v844
    %v846 = vpop.f32.mrf.mxu0
    %v847 = vpop.f32.mrf.mxu0
    %848 = vdwg.mxu0
    %849 = vmatprep.subr.bf16.mxu0 0
    %850 = vmatpush1.bf16.msra.mxu0 %v735
    %851 = vmatprep.subr.bf16.mxu0 0
    %852 = vmatpush1.bf16.msra.mxu0 %v732
    %853 = vmatprep.subr.bf16.mxu0 0
    %854 = vmatpush1.bf16.msra.mxu0 %v729
    %855 = vmatprep.subr.bf16.mxu0 0
    %856 = vmatpush1.bf16.msra.mxu0 %v726
    %857 = vmatprep.subr.bf16.mxu0 0
    %858 = vmatpush1.bf16.msra.mxu0 %v723
    %859 = vmatprep.subr.bf16.mxu0 0
    %860 = vmatpush1.bf16.msra.mxu0 %v720
    %861 = vmatprep.subr.bf16.mxu0 0
    %862 = vmatpush1.bf16.msra.mxu0 %v717
    %863 = vmatprep.subr.bf16.mxu0 0
    %864 = vmatpush1.bf16.msra.mxu0 %v714
    %865 = vmatprep.subr.bf16.mxu0 0
    %866 = vmatpush2.bf16.msra.mxu0 %v759
    %867 = vmatprep.subr.bf16.mxu0 0
    %868 = vmatpush2.bf16.msra.mxu0 %v756
    %869 = vmatprep.subr.bf16.mxu0 0
    %870 = vmatpush2.bf16.msra.mxu0 %v753
    %871 = vmatprep.subr.bf16.mxu0 0
    %872 = vmatpush2.bf16.msra.mxu0 %v750
    %873 = vmatprep.subr.bf16.mxu0 0
    %874 = vmatpush2.bf16.msra.mxu0 %v747
    %875 = vmatprep.subr.bf16.mxu0 0
    %876 = vmatpush2.bf16.msra.mxu0 %v744
    %877 = vmatprep.subr.bf16.mxu0 0
    %878 = vmatpush2.bf16.msra.mxu0 %v741
    %879 = vmatprep.subr.bf16.mxu0 0
    %880 = vmatpush2.bf16.msra.mxu0 %v738
    %881 = vmatprep.mubr.bf16.mxu0 %v551
    %882 = vmatmul.mubr.bf16.gmra.mxu0 %v550
    %v883 = vpop.f32.mrf.mxu0
    %v884 = vadd.f32 %v538, %v883
    %v885 = vpop.f32.mrf.mxu0
    %v886 = vpop.f32.mrf.mxu0
    %v887 = vpop.f32.mrf.mxu0
    %888 = vdwg.mxu0
    %v889 = vpack.c.bf16 %v543, %v543
    %v891 = vlaneseq
    %v892 = vshrl.u32 %v891, 7
    %v893 = vsub.s32 0, %v892
    %v894 = vrot.slane %v272, %v893
    %v895 = vlaneseq
    %v896 = vshrl.u32 %v895, 7
    %v897 = vsub.s32 1, %v896
    %v898 = vrot.slane %v272, %v897
    %v899 = vlaneseq
    %v900 = vshrl.u32 %v899, 7
    %v901 = vsub.s32 2, %v900
    %v902 = vrot.slane %v272, %v901
    %v938 = vunpack.c.l.b16 %v224
    %v939 = vunpack.c.h.b16 %v224
    %v940 = vunpack.c.l.b16 %v225
    %v941 = vunpack.c.l.b16 %v226
    %v942 = vunpack.c.h.b16 %v226
    %v943 = vunpack.c.l.b16 %v227
    %v944 = vunpack.c.l.b16 %v228
    %v945 = vunpack.c.h.b16 %v228
    %v946 = vunpack.c.l.b16 %v229
    %v947 = vunpack.c.l.b16 %v230
    %v948 = vunpack.c.h.b16 %v230
    %v949 = vunpack.c.l.b16 %v231
    %v950 = vunpack.c.l.b16 %v232
    %v951 = vunpack.c.h.b16 %v232
    %v952 = vunpack.c.l.b16 %v233
    %v953 = vunpack.c.l.b16 %v234
    %v954 = vunpack.c.h.b16 %v234
    %v955 = vunpack.c.l.b16 %v235
    %v956 = vunpack.c.l.b16 %v236
    %v957 = vunpack.c.h.b16 %v236
    %v958 = vunpack.c.l.b16 %v237
    %v959 = vunpack.c.l.b16 %v238
    %v960 = vunpack.c.h.b16 %v238
    %v961 = vunpack.c.l.b16 %v239
    %v962 = vunpack.c.l.b16 %v240
    %v963 = vunpack.c.h.b16 %v240
    %v964 = vunpack.c.l.b16 %v241
    %v965 = vunpack.c.l.b16 %v242
    %v966 = vunpack.c.h.b16 %v242
    %v967 = vunpack.c.l.b16 %v243
    %v968 = vunpack.c.l.b16 %v244
    %v969 = vunpack.c.h.b16 %v244
    %v970 = vunpack.c.l.b16 %v245
    %v971 = vunpack.c.l.b16 %v246
    %v972 = vunpack.c.h.b16 %v246
    %v973 = vunpack.c.l.b16 %v247
    %v974 = vunpack.c.l.b16 %v248
    %v975 = vunpack.c.h.b16 %v248
    %v976 = vunpack.c.l.b16 %v249
    %v977 = vunpack.c.l.b16 %v250
    %v978 = vunpack.c.h.b16 %v250
    %v979 = vunpack.c.l.b16 %v251
    %v980 = vunpack.c.l.b16 %v252
    %v981 = vunpack.c.h.b16 %v252
    %v982 = vunpack.c.l.b16 %v253
    %v983 = vunpack.c.l.b16 %v254
    %v984 = vunpack.c.h.b16 %v254
    %v985 = vunpack.c.l.b16 %v255
    %v986 = vpack.c.b16 %v941, %v938
    %v987 = vpack.c.b16 %v942, %v939
    %v988 = vpack.c.b16 %v943, %v940
    %v989 = vpack.c.b16 %v947, %v944
    %v990 = vpack.c.b16 %v948, %v945
    %v991 = vpack.c.b16 %v949, %v946
    %v992 = vpack.c.b16 %v953, %v950
    %v993 = vpack.c.b16 %v954, %v951
    %v994 = vpack.c.b16 %v955, %v952
    %v995 = vpack.c.b16 %v959, %v956
    %v996 = vpack.c.b16 %v960, %v957
    %v997 = vpack.c.b16 %v961, %v958
    %v998 = vpack.c.b16 %v965, %v962
    %v999 = vpack.c.b16 %v966, %v963
    %v1000 = vpack.c.b16 %v967, %v964
    %v1001 = vpack.c.b16 %v971, %v968
    %v1002 = vpack.c.b16 %v972, %v969
    %v1003 = vpack.c.b16 %v973, %v970
    %v1004 = vpack.c.b16 %v977, %v974
    %v1005 = vpack.c.b16 %v978, %v975
    %v1006 = vpack.c.b16 %v979, %v976
    %v1007 = vpack.c.b16 %v983, %v980
    %v1008 = vpack.c.b16 %v984, %v981
    %v1009 = vpack.c.b16 %v985, %v982
    %1034 = vmatprep.subr.bf16.mxu0 %v1008
    %1035 = vmatpush1.bf16.msra.mxu0 %v1007
    %1036 = vmatprep.subr.bf16.mxu0 %v1005
    %1037 = vmatpush1.bf16.msra.mxu0 %v1004
    %1038 = vmatprep.subr.bf16.mxu0 %v1002
    %1039 = vmatpush1.bf16.msra.mxu0 %v1001
    %1040 = vmatprep.subr.bf16.mxu0 %v999
    %1041 = vmatpush1.bf16.msra.mxu0 %v998
    %1042 = vmatprep.subr.bf16.mxu0 %v996
    %1043 = vmatpush1.bf16.msra.mxu0 %v995
    %1044 = vmatprep.subr.bf16.mxu0 %v993
    %1045 = vmatpush1.bf16.msra.mxu0 %v992
    %1046 = vmatprep.subr.bf16.mxu0 %v990
    %1047 = vmatpush1.bf16.msra.mxu0 %v989
    %1048 = vmatprep.subr.bf16.mxu0 %v987
    %1049 = vmatpush1.bf16.msra.mxu0 %v986
    %1050 = vmatprep.subr.bf16.mxu0 0
    %1051 = vmatpush2.bf16.msra.mxu0 0
    %1052 = vmatprep.subr.bf16.mxu0 0
    %1053 = vmatpush2.bf16.msra.mxu0 0
    %1054 = vmatprep.subr.bf16.mxu0 0
    %1055 = vmatpush2.bf16.msra.mxu0 0
    %1056 = vmatprep.subr.bf16.mxu0 0
    %1057 = vmatpush2.bf16.msra.mxu0 0
    %1058 = vmatprep.subr.bf16.mxu0 0
    %1059 = vmatpush2.bf16.msra.mxu0 0
    %1060 = vmatprep.subr.bf16.mxu0 0
    %1061 = vmatpush2.bf16.msra.mxu0 0
    %1062 = vmatprep.subr.bf16.mxu0 0
    %1063 = vmatpush2.bf16.msra.mxu0 0
    %1064 = vmatprep.subr.bf16.mxu0 0
    %1065 = vmatpush2.bf16.msra.mxu0 0
    %1066 = vmatprep.mubr.bf16.mxu0 0
    %1067 = vmatmul.mubr.bf16.gmra.mxu0 %v889
    %v1068 = vpop.f32.mrf.mxu0
    %v1069 = vadd.f32 %v894, %v1068
    %v1070 = vpop.f32.mrf.mxu0
    %v1071 = vadd.f32 %v898, %v1070
    %v1072 = vpop.f32.mrf.mxu0
    %v1073 = vpop.f32.mrf.mxu0
    %1074 = vdwg.mxu0
    %1075 = vmatprep.subr.bf16.mxu0 0
    %1076 = vmatpush1.bf16.msra.mxu0 %v1009
    %1077 = vmatprep.subr.bf16.mxu0 0
    %1078 = vmatpush1.bf16.msra.mxu0 %v1006
    %1079 = vmatprep.subr.bf16.mxu0 0
    %1080 = vmatpush1.bf16.msra.mxu0 %v1003
    %1081 = vmatprep.subr.bf16.mxu0 0
    %1082 = vmatpush1.bf16.msra.mxu0 %v1000
    %1083 = vmatprep.subr.bf16.mxu0 0
    %1084 = vmatpush1.bf16.msra.mxu0 %v997
    %1085 = vmatprep.subr.bf16.mxu0 0
    %1086 = vmatpush1.bf16.msra.mxu0 %v994
    %1087 = vmatprep.subr.bf16.mxu0 0
    %1088 = vmatpush1.bf16.msra.mxu0 %v991
    %1089 = vmatprep.subr.bf16.mxu0 0
    %1090 = vmatpush1.bf16.msra.mxu0 %v988
    %1091 = vmatprep.subr.bf16.mxu0 0
    %1092 = vmatpush2.bf16.msra.mxu0 0
    %1093 = vmatprep.subr.bf16.mxu0 0
    %1094 = vmatpush2.bf16.msra.mxu0 0
    %1095 = vmatprep.subr.bf16.mxu0 0
    %1096 = vmatpush2.bf16.msra.mxu0 0
    %1097 = vmatprep.subr.bf16.mxu0 0
    %1098 = vmatpush2.bf16.msra.mxu0 0
    %1099 = vmatprep.subr.bf16.mxu0 0
    %1100 = vmatpush2.bf16.msra.mxu0 0
    %1101 = vmatprep.subr.bf16.mxu0 0
    %1102 = vmatpush2.bf16.msra.mxu0 0
    %1103 = vmatprep.subr.bf16.mxu0 0
    %1104 = vmatpush2.bf16.msra.mxu0 0
    %1105 = vmatprep.subr.bf16.mxu0 0
    %1106 = vmatpush2.bf16.msra.mxu0 0
    %1107 = vmatprep.mubr.bf16.mxu0 0
    %1108 = vmatmul.mubr.bf16.gmra.mxu0 %v889
    %v1109 = vpop.f32.mrf.mxu0
    %v1110 = vadd.f32 %v902, %v1109
    %v1111 = vpop.f32.mrf.mxu0
    %v1112 = vpop.f32.mrf.mxu0
    %v1113 = vpop.f32.mrf.mxu0
    %1114 = vdwg.mxu0
    %v1115 = vadd.f32 %v843, %v1069
    %v1116 = vxor.u32 %v1115, 2147483648
    %v1117 = vmul.f32 %v1116, 1.442695
    %v1118 = vpow.pop %v1117
    %v1119 = vadd.f32 %v1118, 1.0
    %v1120 = vrcp.pop %v1119
    %v1121 = vmul.f32 1.0, %v1120
    %v1122 = vadd.f32 %v845, %v1071
    %v1123 = vxor.u32 %v1122, 2147483648
    %v1124 = vmul.f32 %v1123, 1.442695
    %v1125 = vpow.pop %v1124
    %v1126 = vadd.f32 %v1125, 1.0
    %v1127 = vrcp.pop %v1126
    %v1128 = vmul.f32 1.0, %v1127
    %v1129 = vmul.f32 %v1121, %v1110
    %v1130 = vadd.f32 %v884, %v1129
    %v1131 = vtanh.pop %v1130
    %v1132 = vsub.f32 1.0, %v1128
    %v1133 = vmul.f32 %v1132, %v1131
    %v1134 = vmul.f32 %v1128, %v543
    %v1135 = vadd.f32 %v1133, %v1134
    %v1136 = vpack.c.bf16 %v1135, %v1135
    %v1138 = vlaneseq
    %v1139 = vshrl.u32 %v1138, 7
    %v1140 = vsub.s32 0, %v1139
    %v1141 = vrot.slane %v273, %v1140
    %v1142 = vlaneseq
    %v1143 = vshrl.u32 %v1142, 7
    %v1144 = vsub.s32 1, %v1143
    %v1145 = vrot.slane %v273, %v1144
    %v1164 = vunpack.c.l.b16 %v256
    %v1165 = vunpack.c.h.b16 %v256
    %v1166 = vunpack.c.l.b16 %v257
    %v1167 = vunpack.c.h.b16 %v257
    %v1168 = vunpack.c.l.b16 %v258
    %v1169 = vunpack.c.h.b16 %v258
    %v1170 = vunpack.c.l.b16 %v259
    %v1171 = vunpack.c.h.b16 %v259
    %v1172 = vunpack.c.l.b16 %v260
    %v1173 = vunpack.c.h.b16 %v260
    %v1174 = vunpack.c.l.b16 %v261
    %v1175 = vunpack.c.h.b16 %v261
    %v1176 = vunpack.c.l.b16 %v262
    %v1177 = vunpack.c.h.b16 %v262
    %v1178 = vunpack.c.l.b16 %v263
    %v1179 = vunpack.c.h.b16 %v263
    %v1180 = vunpack.c.l.b16 %v264
    %v1181 = vunpack.c.h.b16 %v264
    %v1182 = vunpack.c.l.b16 %v265
    %v1183 = vunpack.c.h.b16 %v265
    %v1184 = vunpack.c.l.b16 %v266
    %v1185 = vunpack.c.h.b16 %v266
    %v1186 = vunpack.c.l.b16 %v267
    %v1187 = vunpack.c.h.b16 %v267
    %v1188 = vunpack.c.l.b16 %v268
    %v1189 = vunpack.c.h.b16 %v268
    %v1190 = vunpack.c.l.b16 %v269
    %v1191 = vunpack.c.h.b16 %v269
    %v1192 = vunpack.c.l.b16 %v270
    %v1193 = vunpack.c.h.b16 %v270
    %v1194 = vunpack.c.l.b16 %v271
    %v1195 = vunpack.c.h.b16 %v271
    %v1196 = vpack.c.b16 %v1166, %v1164
    %v1197 = vpack.c.b16 %v1167, %v1165
    %v1198 = vpack.c.b16 %v1170, %v1168
    %v1199 = vpack.c.b16 %v1171, %v1169
    %v1200 = vpack.c.b16 %v1174, %v1172
    %v1201 = vpack.c.b16 %v1175, %v1173
    %v1202 = vpack.c.b16 %v1178, %v1176
    %v1203 = vpack.c.b16 %v1179, %v1177
    %v1204 = vpack.c.b16 %v1182, %v1180
    %v1205 = vpack.c.b16 %v1183, %v1181
    %v1206 = vpack.c.b16 %v1186, %v1184
    %v1207 = vpack.c.b16 %v1187, %v1185
    %v1208 = vpack.c.b16 %v1190, %v1188
    %v1209 = vpack.c.b16 %v1191, %v1189
    %v1210 = vpack.c.b16 %v1194, %v1192
    %v1211 = vpack.c.b16 %v1195, %v1193
    %1228 = vmatprep.subr.bf16.mxu0 %v1211
    %1229 = vmatpush1.bf16.msra.mxu0 %v1210
    %1230 = vmatprep.subr.bf16.mxu0 %v1209
    %1231 = vmatpush1.bf16.msra.mxu0 %v1208
    %1232 = vmatprep.subr.bf16.mxu0 %v1207
    %1233 = vmatpush1.bf16.msra.mxu0 %v1206
    %1234 = vmatprep.subr.bf16.mxu0 %v1205
    %1235 = vmatpush1.bf16.msra.mxu0 %v1204
    %1236 = vmatprep.subr.bf16.mxu0 %v1203
    %1237 = vmatpush1.bf16.msra.mxu0 %v1202
    %1238 = vmatprep.subr.bf16.mxu0 %v1201
    %1239 = vmatpush1.bf16.msra.mxu0 %v1200
    %1240 = vmatprep.subr.bf16.mxu0 %v1199
    %1241 = vmatpush1.bf16.msra.mxu0 %v1198
    %1242 = vmatprep.subr.bf16.mxu0 %v1197
    %1243 = vmatpush1.bf16.msra.mxu0 %v1196
    %1244 = vmatprep.subr.bf16.mxu0 0
    %1245 = vmatpush2.bf16.msra.mxu0 0
    %1246 = vmatprep.subr.bf16.mxu0 0
    %1247 = vmatpush2.bf16.msra.mxu0 0
    %1248 = vmatprep.subr.bf16.mxu0 0
    %1249 = vmatpush2.bf16.msra.mxu0 0
    %1250 = vmatprep.subr.bf16.mxu0 0
    %1251 = vmatpush2.bf16.msra.mxu0 0
    %1252 = vmatprep.subr.bf16.mxu0 0
    %1253 = vmatpush2.bf16.msra.mxu0 0
    %1254 = vmatprep.subr.bf16.mxu0 0
    %1255 = vmatpush2.bf16.msra.mxu0 0
    %1256 = vmatprep.subr.bf16.mxu0 0
    %1257 = vmatpush2.bf16.msra.mxu0 0
    %1258 = vmatprep.subr.bf16.mxu0 0
    %1259 = vmatpush2.bf16.msra.mxu0 0
    %1260 = vmatprep.mubr.bf16.mxu0 0
    %1261 = vmatmul.mubr.bf16.gmra.mxu0 %v1136
    %v1262 = vpop.f32.mrf.mxu0
    %v1263 = vadd.f32 %v1141, %v1262
    %v1264 = vpop.f32.mrf.mxu0
    %v1265 = vadd.f32 %v1145, %v1264
    %v1266 = vpop.f32.mrf.mxu0
    %v1267 = vpop.f32.mrf.mxu0
    %1268 = vdwg.mxu0
    %1269 = vst [vmem:[#allocation18] sm:$0xff] %v1263
    %1270 = vst [vmem:[#allocation18 + $0x8] sm:$0xff] %v1265
    %v1271 = vsel %vm276, %v1263, -1e+30
    %v1272 = vsel %vm277, %v1265, -1e+30
    %v1273 = vld [vmem:[#allocation17] sm:$0xff]
    %v1274 = vld [vmem:[#allocation17 + $0x8] sm:$0xff]
    %v1275 = vadd.f32 %v1271, %v1273
    %v1276 = vadd.f32 %v1272, %v1274
    %v1277 = vmax.f32 %v1275, %v1276
    %1278 = vmax.xlane.f32.xlu0 %v1277
    %v1279 = vpop.xlane.xlu0 %1278
    %vm1280 = vcmp.eq.f32.partialorder %v1275, %v1279
    %vm1281 = vcmp.eq.f32.partialorder %v1276, %v1279
    %v1282 = vsel %vm1280, %v281, 256.0
    %v1283 = vsel %vm1281, %v282, 256.0
    %v1284 = vmin.f32 %v1282, %v1283
    %1285 = vmin.xlane.f32.xlu0 %v1284
    %v1286 = vpop.xlane.xlu0 %1285
    %v1287 = vmin.f32 %v1286, 255.0
    %v1288 = vcvt.f32.s32.to.zero.pseudo %v1287
    %vm1289 = vcmask 7168
    %1290 = vst.msk [vmem:[%s13] sm:$0xff] %vm1289, %v1288
    %vm1291 = vcmp.eq.s32.totalorder %v279, %v1288
    %vm1292 = vcmp.eq.s32.totalorder %v280, %v1288
    %v1293 = vsel %vm1291, 1.0, 0.0
    %v1294 = vsel %vm1292, 1.0, 0.0
    %v1295 = vpack.c.bf16 %v1293, %v1293
    %v1296 = vpack.c.bf16 %v1294, %v1294
    %1297 = vmatprep.subr.bf16.mxu0 %v734
    %1298 = vmatpush1.bf16.msra.mxu0 %v733
    %1299 = vmatprep.subr.bf16.mxu0 %v731
    %1300 = vmatpush1.bf16.msra.mxu0 %v730
    %1301 = vmatprep.subr.bf16.mxu0 %v728
    %1302 = vmatpush1.bf16.msra.mxu0 %v727
    %1303 = vmatprep.subr.bf16.mxu0 %v725
    %1304 = vmatpush1.bf16.msra.mxu0 %v724
    %1305 = vmatprep.subr.bf16.mxu0 %v722
    %1306 = vmatpush1.bf16.msra.mxu0 %v721
    %1307 = vmatprep.subr.bf16.mxu0 %v719
    %1308 = vmatpush1.bf16.msra.mxu0 %v718
    %1309 = vmatprep.subr.bf16.mxu0 %v716
    %1310 = vmatpush1.bf16.msra.mxu0 %v715
    %1311 = vmatprep.subr.bf16.mxu0 %v713
    %1312 = vmatpush1.bf16.msra.mxu0 %v712
    %1313 = vmatprep.subr.bf16.mxu0 %v758
    %1314 = vmatpush2.bf16.msra.mxu0 %v757
    %1315 = vmatprep.subr.bf16.mxu0 %v755
    %1316 = vmatpush2.bf16.msra.mxu0 %v754
    %1317 = vmatprep.subr.bf16.mxu0 %v752
    %1318 = vmatpush2.bf16.msra.mxu0 %v751
    %1319 = vmatprep.subr.bf16.mxu0 %v749
    %1320 = vmatpush2.bf16.msra.mxu0 %v748
    %1321 = vmatprep.subr.bf16.mxu0 %v746
    %1322 = vmatpush2.bf16.msra.mxu0 %v745
    %1323 = vmatprep.subr.bf16.mxu0 %v743
    %1324 = vmatpush2.bf16.msra.mxu0 %v742
    %1325 = vmatprep.subr.bf16.mxu0 %v740
    %1326 = vmatpush2.bf16.msra.mxu0 %v739
    %1327 = vmatprep.subr.bf16.mxu0 %v737
    %1328 = vmatpush2.bf16.msra.mxu0 %v736
    %1329 = vmatprep.mubr.bf16.mxu0 %v1296
    %1330 = vmatmul.mubr.bf16.gmra.mxu0 %v1295
    %v1331 = vpop.f32.mrf.mxu0
    %v1332 = vadd.f32 %v497, %v1331
    %v1333 = vpop.f32.mrf.mxu0
    %v1334 = vadd.f32 %v499, %v1333
    %v1335 = vpop.f32.mrf.mxu0
    %v1336 = vpop.f32.mrf.mxu0
    %1337 = vdwg.mxu0
    %1338 = vmatprep.subr.bf16.mxu0 0
    %1339 = vmatpush1.bf16.msra.mxu0 %v735
    %1340 = vmatprep.subr.bf16.mxu0 0
    %1341 = vmatpush1.bf16.msra.mxu0 %v732
    %1342 = vmatprep.subr.bf16.mxu0 0
    %1343 = vmatpush1.bf16.msra.mxu0 %v729
    %1344 = vmatprep.subr.bf16.mxu0 0
    %1345 = vmatpush1.bf16.msra.mxu0 %v726
    %1346 = vmatprep.subr.bf16.mxu0 0
    %1347 = vmatpush1.bf16.msra.mxu0 %v723
    %1348 = vmatprep.subr.bf16.mxu0 0
    %1349 = vmatpush1.bf16.msra.mxu0 %v720
    %1350 = vmatprep.subr.bf16.mxu0 0
    %1351 = vmatpush1.bf16.msra.mxu0 %v717
    %1352 = vmatprep.subr.bf16.mxu0 0
    %1353 = vmatpush1.bf16.msra.mxu0 %v714
    %1354 = vmatprep.subr.bf16.mxu0 0
    %1355 = vmatpush2.bf16.msra.mxu0 %v759
    %1356 = vmatprep.subr.bf16.mxu0 0
    %1357 = vmatpush2.bf16.msra.mxu0 %v756
    %1358 = vmatprep.subr.bf16.mxu0 0
    %1359 = vmatpush2.bf16.msra.mxu0 %v753
    %1360 = vmatprep.subr.bf16.mxu0 0
    %1361 = vmatpush2.bf16.msra.mxu0 %v750
    %1362 = vmatprep.subr.bf16.mxu0 0
    %1363 = vmatpush2.bf16.msra.mxu0 %v747
    %1364 = vmatprep.subr.bf16.mxu0 0
    %1365 = vmatpush2.bf16.msra.mxu0 %v744
    %1366 = vmatprep.subr.bf16.mxu0 0
    %1367 = vmatpush2.bf16.msra.mxu0 %v741
    %1368 = vmatprep.subr.bf16.mxu0 0
    %1369 = vmatpush2.bf16.msra.mxu0 %v738
    %1370 = vmatprep.mubr.bf16.mxu0 %v1296
    %1371 = vmatmul.mubr.bf16.gmra.mxu0 %v1295
    %v1372 = vpop.f32.mrf.mxu0
    %v1373 = vadd.f32 %v538, %v1372
    %v1374 = vpop.f32.mrf.mxu0
    %v1375 = vpop.f32.mrf.mxu0
    %v1376 = vpop.f32.mrf.mxu0
    %1377 = vdwg.mxu0
    %1378 = vmatprep.subr.bf16.mxu0 %v1008
    %1379 = vmatpush1.bf16.msra.mxu0 %v1007
    %1380 = vmatprep.subr.bf16.mxu0 %v1005
    %1381 = vmatpush1.bf16.msra.mxu0 %v1004
    %1382 = vmatprep.subr.bf16.mxu0 %v1002
    %1383 = vmatpush1.bf16.msra.mxu0 %v1001
    %1384 = vmatprep.subr.bf16.mxu0 %v999
    %1385 = vmatpush1.bf16.msra.mxu0 %v998
    %1386 = vmatprep.subr.bf16.mxu0 %v996
    %1387 = vmatpush1.bf16.msra.mxu0 %v995
    %1388 = vmatprep.subr.bf16.mxu0 %v993
    %1389 = vmatpush1.bf16.msra.mxu0 %v992
    %1390 = vmatprep.subr.bf16.mxu0 %v990
    %1391 = vmatpush1.bf16.msra.mxu0 %v989
    %1392 = vmatprep.subr.bf16.mxu0 %v987
    %1393 = vmatpush1.bf16.msra.mxu0 %v986
    %1394 = vmatprep.subr.bf16.mxu0 0
    %1395 = vmatpush2.bf16.msra.mxu0 0
    %1396 = vmatprep.subr.bf16.mxu0 0
    %1397 = vmatpush2.bf16.msra.mxu0 0
    %1398 = vmatprep.subr.bf16.mxu0 0
    %1399 = vmatpush2.bf16.msra.mxu0 0
    %1400 = vmatprep.subr.bf16.mxu0 0
    %1401 = vmatpush2.bf16.msra.mxu0 0
    %1402 = vmatprep.subr.bf16.mxu0 0
    %1403 = vmatpush2.bf16.msra.mxu0 0
    %1404 = vmatprep.subr.bf16.mxu0 0
    %1405 = vmatpush2.bf16.msra.mxu0 0
    %1406 = vmatprep.subr.bf16.mxu0 0
    %1407 = vmatpush2.bf16.msra.mxu0 0
    %1408 = vmatprep.subr.bf16.mxu0 0
    %1409 = vmatpush2.bf16.msra.mxu0 0
    %1410 = vmatprep.mubr.bf16.mxu0 0
    %1411 = vmatmul.mubr.bf16.gmra.mxu0 %v1136
    %v1412 = vpop.f32.mrf.mxu0
    %v1413 = vadd.f32 %v894, %v1412
    %v1414 = vpop.f32.mrf.mxu0
    %v1415 = vadd.f32 %v898, %v1414
    %v1416 = vpop.f32.mrf.mxu0
    %v1417 = vpop.f32.mrf.mxu0
    %1418 = vdwg.mxu0
    %1419 = vmatprep.subr.bf16.mxu0 0
    %1420 = vmatpush1.bf16.msra.mxu0 %v1009
    %1421 = vmatprep.subr.bf16.mxu0 0
    %1422 = vmatpush1.bf16.msra.mxu0 %v1006
    %1423 = vmatprep.subr.bf16.mxu0 0
    %1424 = vmatpush1.bf16.msra.mxu0 %v1003
    %1425 = vmatprep.subr.bf16.mxu0 0
    %1426 = vmatpush1.bf16.msra.mxu0 %v1000
    %1427 = vmatprep.subr.bf16.mxu0 0
    %1428 = vmatpush1.bf16.msra.mxu0 %v997
    %1429 = vmatprep.subr.bf16.mxu0 0
    %1430 = vmatpush1.bf16.msra.mxu0 %v994
    %1431 = vmatprep.subr.bf16.mxu0 0
    %1432 = vmatpush1.bf16.msra.mxu0 %v991
    %1433 = vmatprep.subr.bf16.mxu0 0
    %1434 = vmatpush1.bf16.msra.mxu0 %v988
    %1435 = vmatprep.subr.bf16.mxu0 0
    %1436 = vmatpush2.bf16.msra.mxu0 0
    %1437 = vmatprep.subr.bf16.mxu0 0
    %1438 = vmatpush2.bf16.msra.mxu0 0
    %1439 = vmatprep.subr.bf16.mxu0 0
    %1440 = vmatpush2.bf16.msra.mxu0 0
    %1441 = vmatprep.subr.bf16.mxu0 0
    %1442 = vmatpush2.bf16.msra.mxu0 0
    %1443 = vmatprep.subr.bf16.mxu0 0
    %1444 = vmatpush2.bf16.msra.mxu0 0
    %1445 = vmatprep.subr.bf16.mxu0 0
    %1446 = vmatpush2.bf16.msra.mxu0 0
    %1447 = vmatprep.subr.bf16.mxu0 0
    %1448 = vmatpush2.bf16.msra.mxu0 0
    %1449 = vmatprep.subr.bf16.mxu0 0
    %1450 = vmatpush2.bf16.msra.mxu0 0
    %1451 = vmatprep.mubr.bf16.mxu0 0
    %1452 = vmatmul.mubr.bf16.gmra.mxu0 %v1136
    %v1453 = vpop.f32.mrf.mxu0
    %v1454 = vadd.f32 %v902, %v1453
    %v1455 = vpop.f32.mrf.mxu0
    %v1456 = vpop.f32.mrf.mxu0
    %v1457 = vpop.f32.mrf.mxu0
    %1458 = vdwg.mxu0
    %v1459 = vadd.f32 %v1332, %v1413
    %v1460 = vxor.u32 %v1459, 2147483648
    %v1461 = vmul.f32 %v1460, 1.442695
    %v1462 = vpow.pop %v1461
    %v1463 = vadd.f32 %v1462, 1.0
    %v1464 = vrcp.pop %v1463
    %v1465 = vmul.f32 1.0, %v1464
    %v1466 = vadd.f32 %v1334, %v1415
    %v1467 = vxor.u32 %v1466, 2147483648
    %v1468 = vmul.f32 %v1467, 1.442695
    %v1469 = vpow.pop %v1468
    %v1470 = vadd.f32 %v1469, 1.0
    %v1471 = vrcp.pop %v1470
    %v1472 = vmul.f32 1.0, %v1471
    %v1473 = vmul.f32 %v1465, %v1454
    %v1474 = vadd.f32 %v1373, %v1473
    %v1475 = vtanh.pop %v1474
    %v1476 = vsub.f32 1.0, %v1472
    %v1477 = vmul.f32 %v1476, %v1475
    %v1478 = vmul.f32 %v1472, %v1135
    %v1479 = vadd.f32 %v1477, %v1478
    %v1480 = vpack.c.bf16 %v1479, %v1479
    %1481 = vmatprep.subr.bf16.mxu0 %v1211
    %1482 = vmatpush1.bf16.msra.mxu0 %v1210
    %1483 = vmatprep.subr.bf16.mxu0 %v1209
    %1484 = vmatpush1.bf16.msra.mxu0 %v1208
    %1485 = vmatprep.subr.bf16.mxu0 %v1207
    %1486 = vmatpush1.bf16.msra.mxu0 %v1206
    %1487 = vmatprep.subr.bf16.mxu0 %v1205
    %1488 = vmatpush1.bf16.msra.mxu0 %v1204
    %1489 = vmatprep.subr.bf16.mxu0 %v1203
    %1490 = vmatpush1.bf16.msra.mxu0 %v1202
    %1491 = vmatprep.subr.bf16.mxu0 %v1201
    %1492 = vmatpush1.bf16.msra.mxu0 %v1200
    %1493 = vmatprep.subr.bf16.mxu0 %v1199
    %1494 = vmatpush1.bf16.msra.mxu0 %v1198
    %1495 = vmatprep.subr.bf16.mxu0 %v1197
    %1496 = vmatpush1.bf16.msra.mxu0 %v1196
    %1497 = vmatprep.subr.bf16.mxu0 0
    %1498 = vmatpush2.bf16.msra.mxu0 0
    %1499 = vmatprep.subr.bf16.mxu0 0
    %1500 = vmatpush2.bf16.msra.mxu0 0
    %1501 = vmatprep.subr.bf16.mxu0 0
    %1502 = vmatpush2.bf16.msra.mxu0 0
    %1503 = vmatprep.subr.bf16.mxu0 0
    %1504 = vmatpush2.bf16.msra.mxu0 0
    %1505 = vmatprep.subr.bf16.mxu0 0
    %1506 = vmatpush2.bf16.msra.mxu0 0
    %1507 = vmatprep.subr.bf16.mxu0 0
    %1508 = vmatpush2.bf16.msra.mxu0 0
    %1509 = vmatprep.subr.bf16.mxu0 0
    %1510 = vmatpush2.bf16.msra.mxu0 0
    %1511 = vmatprep.subr.bf16.mxu0 0
    %1512 = vmatpush2.bf16.msra.mxu0 0
    %1513 = vmatprep.mubr.bf16.mxu0 0
    %1514 = vmatmul.mubr.bf16.gmra.mxu0 %v1480
    %v1515 = vpop.f32.mrf.mxu0
    %v1516 = vadd.f32 %v1141, %v1515
    %v1517 = vpop.f32.mrf.mxu0
    %v1518 = vadd.f32 %v1145, %v1517
    %v1519 = vpop.f32.mrf.mxu0
    %v1520 = vpop.f32.mrf.mxu0
    %1521 = vdwg.mxu0
    %s1522 = scalar_lea.vmem [#allocation18], 16
    %1523 = vst [vmem:[%s1522] sm:$0xff] %v1516
    %1524 = vst [vmem:[%s1522 + $0x8] sm:$0xff] %v1518
    %v1525 = vsel %vm276, %v1516, -1e+30
    %v1526 = vsel %vm277, %v1518, -1e+30
    %s1527 = scalar_lea.vmem [#allocation17], 16
    %v1528 = vld [vmem:[%s1527] sm:$0xff]
    %v1529 = vld [vmem:[%s1527 + $0x8] sm:$0xff]
    %v1530 = vadd.f32 %v1525, %v1528
    %v1531 = vadd.f32 %v1526, %v1529
    %v1532 = vmax.f32 %v1530, %v1531
    %1533 = vmax.xlane.f32.xlu0 %v1532
    %v1534 = vpop.xlane.xlu0 %1533
    %vm1535 = vcmp.eq.f32.partialorder %v1530, %v1534
    %vm1536 = vcmp.eq.f32.partialorder %v1531, %v1534
    %v1537 = vsel %vm1535, %v281, 256.0
    %v1538 = vsel %vm1536, %v282, 256.0
    %v1539 = vmin.f32 %v1537, %v1538
    %1540 = vmin.xlane.f32.xlu0 %v1539
    %v1541 = vpop.xlane.xlu0 %1540
    %v1542 = vmin.f32 %v1541, 255.0
    %v1543 = vcvt.f32.s32.to.zero.pseudo %v1542
    %s1544 = scalar_lea.vmem %s13, 8
    %1545 = vst.msk [vmem:[%s1544] sm:$0xff] %vm1289, %v1543
    // Predicated region
    $region86: #{tpu_custom_call.1} parent=1 // pred_check
      _
    $region87: #{tpu_custom_call.1} parent=1 // pred_check_branch
      %1547 = sbr.rel (0) target = $region89
    $region88: #{tpu_custom_call.1} parent=1 // pred_region
      %s1549 = ssub.s32 512, 512
      %1550 = vsyncadd [#allocation5], %s1549
      %s1551 = sshll.u32 [#allocation18], 4
      %s1552 = int_to_ptr.vmem [resolvable:$true] %s1551
      %1557 = dma.vmem_to_hbm [thread:$0]  %s1552, 512, %s12, [#allocation5], 256, 256, 16
    $region89: #{tpu_custom_call.1} parent=1 // pred_fallthru
      _
    // Predicated region
    $region90: #{tpu_custom_call.1} parent=1 // pred_check
      _
    $region91: #{tpu_custom_call.1} parent=1 // pred_check_branch
      %1559 = sbr.rel (0) target = $region93
    $region92: #{tpu_custom_call.1} parent=1 // pred_region
      _
    $region93: #{tpu_custom_call.1} parent=1 // pred_fallthru
      _
    // Predicated region
    $region94: #{tpu_custom_call.1} parent=1 // pred_check
      _
    $region95: #{tpu_custom_call.1} parent=1 // pred_check_branch
      %1561 = sbr.rel (0) target = $region97
    $region96: #{tpu_custom_call.1} parent=1 // pred_region
      %1562 = dma.done [#allocation5], 512
    $region97: #{tpu_custom_call.1} parent=1 // pred_fallthru
      _
    // Predicated region
    $region98: #{tpu_custom_call.1} parent=1 // pred_check
      _
    $region99: #{tpu_custom_call.1} parent=1 // pred_check_branch
      %1564 = sbr.rel (0) target = $region101
    $region100: #{tpu_custom_call.1} parent=1 // pred_region
      _
    $region101: #{tpu_custom_call.1} parent=1 // pred_fallthru
      _
    %1565 = vsyncpa [#allocation4], 1
    %1566 = vsyncpa [#allocation7], 1
    %1567 = vsyncpa [#allocation10], 1
    %1568 = vsyncpa [#allocation13], 1
    %1569 = vsyncpa [#allocation16], 1
    %1570 = vsyncpa [#allocation5], 1

</llo_original>
